<compile_context>
chip_gen: v7x
topology: tpu7x:2x2x1
jax: 0.10.0
libtpu: 0.0.40
codegen_flags: <defaults>
</compile_context>

<pallas_src>
import functools
import math

import jax
import jax.numpy as jnp
from jax.experimental import pallas as pl
from jax.experimental.pallas import tpu as pltpu

mm = 1e-3  # metres

# -------------------- module "__init__" configuration --------------------
HOLO_UNIT = 1
HOLO_SIZE = [32, 32]
HOLO_RANK = 6
TOLERANCE = 1e-4
MATERIAL = [2.5, 0.01]          # [epsilon, tand]
EPSILON = float(MATERIAL[0])
TAND = float(MATERIAL[1])
SQRT_EPS = math.sqrt(EPSILON)

H = HOLO_SIZE[0] // (HOLO_UNIT * 2)     # quad height (16)
W = HOLO_SIZE[1] // (HOLO_UNIT * 2)     # quad width  (16)
HF = 2 * H * HOLO_UNIT                  # full thickness height (32)
WF = 2 * W * HOLO_UNIT                  # full thickness width  (32)
NPIX = HF * WF                          # lane-dense flattened plane (1024)


# ------------------ kernel: apply complex phase shift ----------------------
def apply_phase_kernel(coef_ref, thick_ref, field_ref, out_ref, *, n_batch, n_wl):
    """coef_ref : SMEM (3, n_wl) f32, rows = [c_loss, c_phi, c_off].
       thick_ref: VMEM (1, NPIX) f32 flattened thickness map.
       field_ref: VMEM (2, n_batch*n_wl, NPIX) f32, axis 0 = [real, imag].
       out_ref  : VMEM (2, n_batch*n_wl, NPIX) f32 (same planar layout).
    """
    n_rows = n_batch * n_wl
    npix = thick_ref.shape[1]
    t = thick_ref[...]                                     # (1, NPIX)

    # Build per-row coefficient planes from SMEM scalars with masked selects
    # (row r uses wavelength r % n_wl).  This is ~15 cheap VPU ops, needs no
    # sublane concat/relayout, and keeps the heavy math fully sublane-packed.
    row = jax.lax.broadcasted_iota(jnp.int32, (n_rows, npix), 0)
    c_loss = jnp.zeros((n_rows, npix), jnp.float32)
    c_phi = jnp.zeros((n_rows, npix), jnp.float32)
    c_off = jnp.zeros((n_rows, npix), jnp.float32)
    for l in range(n_wl):                       # static unroll (n_wl small)
        m = row == l
        for b in range(1, n_batch):
            m = m | (row == l + b * n_wl)
        c_loss = jnp.where(m, coef_ref[0, l], c_loss)      # SMEM scalar splat
        c_phi = jnp.where(m, coef_ref[1, l], c_phi)
        c_off = jnp.where(m, coef_ref[2, l], c_off)

    # Phase tables: one exp/cos/sin per element on (B*L, NPIX). The extra xB
    # EUP work vs. an (L, NPIX) table is negligible (EUP nowhere near
    # saturated) and buys fully packed VPU FMAs below.
    loss = jnp.exp(c_loss * t)                  # exp(-0.5*k*t*tand*sqrt(eps))
    phi = c_phi * t + c_off                     # k*(t*(sqrt(eps)-1) + max_t)
    ps_r = loss * jnp.cos(phi)
    ps_s = loss * jnp.sin(phi)                  # sign folded into FMAs below

    fr = field_ref[0]                           # (B*L, NPIX)
    fi = field_ref[1]
    # out = field * (ps_r - i*ps_s):  2 mul + 2 FMA per element, no negates.
    out_ref[0] = fr * ps_r + fi * ps_s
    out_ref[1] = fi * ps_r - fr * ps_s


def apply_phase(coefs, thickness_flat, field, *, n_batch, n_wl,
                donate_field=False):
    """field: (2, n_batch*n_wl, NPIX) f32 planar (real/imag) buffer."""
    two, n_rows, npix = field.shape
    assert two == 2 and n_rows == n_batch * n_wl
    kernel = functools.partial(apply_phase_kernel, n_batch=n_batch, n_wl=n_wl)
    field_spec = pl.BlockSpec((2, n_rows, npix), lambda: (0, 0, 0))
    # TODO(synk): when B*L or the aperture scales, add a grid axis over B*L
    # with compiler_params=pltpu.CompilerParams(dimension_semantics=
    # ("parallel", ...)) so v7x's second TensorCore is used, and tile the
    # NPIX axis in 512-2048 lane chunks budgeted against scoped VMEM
    # (v5e: 16 MiB default, v6e/v7x: 32 MiB; v7x physical VMEM is only
    # 64 MiB) — or raise vmem_limit_bytes explicitly.
    return pl.pallas_call(
        kernel,
        out_shape=jax.ShapeDtypeStruct((2, n_rows, npix), jnp.float32),
        in_specs=[
            pl.BlockSpec(memory_space=pltpu.MemorySpace.SMEM),  # (3, L) coefs
            pl.BlockSpec((1, npix), lambda: (0, 0)),            # thickness
            field_spec,                                         # planar field
        ],
        out_specs=field_spec,
        # Alias the field buffer onto the output only when the caller donates
        # it at the jit boundary (donate_argnums) and never reuses it;
        # otherwise XLA inserts a defensive copy and the alias *costs* a full
        # HBM pass instead of saving one.
        input_output_aliases={2: 0} if donate_field else {},
    )(coefs, thickness_flat, field)


# ------------------------------- glue (plain JAX) ---------------------------
def copy_quad_to_full(quad):
    half_left = jnp.concatenate([jnp.flip(quad, axis=0), quad], axis=0)
    full = jnp.concatenate([jnp.flip(half_left, axis=1), half_left], axis=1)
    return full


def rank_x_hologram_forward(field_ri, wavelengths, noise_key):
    """field_ri: f32 (2, B, L, HF, WF) planar field, axis 0 = [real, imag]
       (bit-for-bit the same information as a complex64 (B, L, HF, WF) field;
       a complex caller converts with one fused jnp.stack([x.real, x.imag])).
       Returns (out_ri, thickness, max_thickness)."""
    two, B, L, Hf, Wf = field_ri.shape
    assert two == 2

    # Deterministic "parameters" (nn.Parameter init: ones * 0.01) — the tiny
    # rank-6 matmul + sigmoid + mirror + tile stays in plain JAX on purpose
    # (sub-1% MXU occupancy; a dedicated kernel would only add overhead).
    row_init = jnp.ones((H, HOLO_RANK), dtype=jnp.float32) * 0.01
    col_init = jnp.ones((HOLO_RANK, W), dtype=jnp.float32) * 0.01
    quad = (5.0 * mm) * jax.nn.sigmoid(row_init @ col_init)       # (H, W)

    unit_thickness = copy_quad_to_full(quad)                      # (2H, 2W)
    thickness = jnp.tile(unit_thickness, (HOLO_UNIT, HOLO_UNIT))  # (HF, WF)

    # TODO(synk): UniformNoise(a=tolerance) assumed to be additive U(-a, a).
    noise = jax.random.uniform(noise_key, thickness.shape,
                               minval=-TOLERANCE, maxval=TOLERANCE,
                               dtype=jnp.float32)
    thickness = thickness + noise
    max_thick = jnp.max(thickness)

    # Per-wavelength scalar coefficients (SMEM payload). k*max_thick is
    # reduced mod 2*pi so f32 sin/cos stays accurate at short wavelengths.
    k = (2.0 * jnp.pi) / wavelengths.astype(jnp.float32)          # (L,)
    c_loss = -0.5 * k * TAND * SQRT_EPS
    c_phi = k * (SQRT_EPS - 1.0)
    c_off = jnp.mod(k * max_thick, 2.0 * jnp.pi)
    coefs = jnp.stack([c_loss, c_phi, c_off], axis=0).astype(jnp.float32)

    # Free row-major reshapes: lane-dense (last dim = HF*WF = 1024) and the
    # batch/wavelength dims packed into sublanes.
    field_flat = field_ri.reshape(2, B * L, Hf * Wf)
    thickness_flat = thickness.reshape(1, Hf * Wf)

    out_flat = apply_phase(coefs, thickness_flat, field_flat,
                           n_batch=B, n_wl=L)
    out_ri = out_flat.reshape(2, B, L, Hf, Wf)
    return out_ri, thickness, max_thick


# ------------------------------ reference ----------------------------------
def reference_forward(field_data, wavelengths, thickness, max_thick):
    lam = wavelengths.reshape(-1, 1, 1)
    k = 2.0 * jnp.pi / lam
    t = thickness[None, :, :]
    loss = jnp.exp(-0.5 * k * t * TAND * jnp.sqrt(EPSILON))
    phase_delay = jnp.exp(-1j * k * t * (jnp.sqrt(EPSILON) - 1.0))
    air_phase = jnp.exp(-1j * k * max_thick)
    phase_shift = loss * phase_delay * air_phase                   # (L, HF, WF)
    return field_data * phase_shift[None, :, :, :]


if __name__ == "__main__":
    key = jax.random.PRNGKey(0)
    k_fr, k_fi, k_noise = jax.random.split(key, 3)

    B, L = 2, 3
    wavelengths = jnp.array([0.5 * mm, 1.0 * mm, 1.5 * mm], dtype=jnp.float32)
    field_r = jax.random.normal(k_fr, (B, L, HF, WF), dtype=jnp.float32)
    field_i = jax.random.normal(k_fi, (B, L, HF, WF), dtype=jnp.float32)
    # Kernel-native planar layout (axis 0 = [real, imag]).
    field_ri = jnp.stack([field_r, field_i], axis=0)

    fwd = jax.jit(rank_x_hologram_forward)
    out_ri, thickness, max_thick = jax.block_until_ready(
        fwd(field_ri, wavelengths, k_noise))

    # Reference check (complex math, test-only path).
    field_c = (field_r + 1j * field_i).astype(jnp.complex64)
    ref = reference_forward(field_c, wavelengths, thickness, max_thick)
    out_c = (out_ri[0] + 1j * out_ri[1]).astype(jnp.complex64)
    assert jnp.allclose(out_c, ref, atol=1e-4, rtol=1e-4), "mismatch vs reference"

    print("KERNEL_OK")
</pallas_src>

<mosaic_0001>
module attributes {stable_mosaic.version = 11 : i64} {
  func.func @apply_phase_kernel(%arg0: memref<3x3xf32, #tpu.memory_space<smem>>, %arg1: memref<1x1024xf32, #tpu.memory_space<vmem>>, %arg2: memref<2x6x1024xf32, #tpu.memory_space<vmem>>, %arg3: memref<2x6x1024xf32, #tpu.memory_space<vmem>>) attributes {dimension_semantics = [], scalar_prefetch = 0 : i64, scratch_operands = 0 : i64, tpu.core_type = #tpu.core_type<tc>} {
    %c0 = arith.constant 0 : index
    %c0_0 = arith.constant 0 : index
    %0 = vector.load %arg1[%c0, %c0_0] : memref<1x1024xf32, #tpu.memory_space<vmem>>, vector<1x1024xf32>
    %1 = tpu.iota {dimensions = array<i32: 0>} : vector<6x1024xi32>
    %cst = arith.constant 0.000000e+00 : f32
    %2 = vector.broadcast %cst : f32 to vector<6x1024xf32>
    %cst_1 = arith.constant 0.000000e+00 : f32
    %3 = vector.broadcast %cst_1 : f32 to vector<6x1024xf32>
    %cst_2 = arith.constant 0.000000e+00 : f32
    %4 = vector.broadcast %cst_2 : f32 to vector<6x1024xf32>
    %c0_i32 = arith.constant 0 : i32
    %5 = vector.broadcast %c0_i32 : i32 to vector<6x1024xi32>
    %6 = arith.cmpi eq, %1, %5 : vector<6x1024xi32>
    %c3_i32 = arith.constant 3 : i32
    %7 = vector.broadcast %c3_i32 : i32 to vector<6x1024xi32>
    %8 = arith.cmpi eq, %1, %7 : vector<6x1024xi32>
    %9 = arith.ori %6, %8 : vector<6x1024xi1>
    %c0_3 = arith.constant 0 : index
    %c0_4 = arith.constant 0 : index
    %10 = memref.load %arg0[%c0_3, %c0_4] : memref<3x3xf32, #tpu.memory_space<smem>>
    %11 = vector.broadcast %10 : f32 to vector<6x1024xf32>
    %12 = arith.select %9, %11, %2 : vector<6x1024xi1>, vector<6x1024xf32>
    %c1 = arith.constant 1 : index
    %c0_5 = arith.constant 0 : index
    %13 = memref.load %arg0[%c1, %c0_5] : memref<3x3xf32, #tpu.memory_space<smem>>
    %14 = vector.broadcast %13 : f32 to vector<6x1024xf32>
    %15 = arith.select %9, %14, %3 : vector<6x1024xi1>, vector<6x1024xf32>
    %c2 = arith.constant 2 : index
    %c0_6 = arith.constant 0 : index
    %16 = memref.load %arg0[%c2, %c0_6] : memref<3x3xf32, #tpu.memory_space<smem>>
    %17 = vector.broadcast %16 : f32 to vector<6x1024xf32>
    %18 = arith.select %9, %17, %4 : vector<6x1024xi1>, vector<6x1024xf32>
    %c1_i32 = arith.constant 1 : i32
    %19 = vector.broadcast %c1_i32 : i32 to vector<6x1024xi32>
    %20 = arith.cmpi eq, %1, %19 : vector<6x1024xi32>
    %c4_i32 = arith.constant 4 : i32
    %21 = vector.broadcast %c4_i32 : i32 to vector<6x1024xi32>
    %22 = arith.cmpi eq, %1, %21 : vector<6x1024xi32>
    %23 = arith.ori %20, %22 : vector<6x1024xi1>
    %c0_7 = arith.constant 0 : index
    %c1_8 = arith.constant 1 : index
    %24 = memref.load %arg0[%c0_7, %c1_8] : memref<3x3xf32, #tpu.memory_space<smem>>
    %25 = vector.broadcast %24 : f32 to vector<6x1024xf32>
    %26 = arith.select %23, %25, %12 : vector<6x1024xi1>, vector<6x1024xf32>
    %c1_9 = arith.constant 1 : index
    %c1_10 = arith.constant 1 : index
    %27 = memref.load %arg0[%c1_9, %c1_10] : memref<3x3xf32, #tpu.memory_space<smem>>
    %28 = vector.broadcast %27 : f32 to vector<6x1024xf32>
    %29 = arith.select %23, %28, %15 : vector<6x1024xi1>, vector<6x1024xf32>
    %c2_11 = arith.constant 2 : index
    %c1_12 = arith.constant 1 : index
    %30 = memref.load %arg0[%c2_11, %c1_12] : memref<3x3xf32, #tpu.memory_space<smem>>
    %31 = vector.broadcast %30 : f32 to vector<6x1024xf32>
    %32 = arith.select %23, %31, %18 : vector<6x1024xi1>, vector<6x1024xf32>
    %c2_i32 = arith.constant 2 : i32
    %33 = vector.broadcast %c2_i32 : i32 to vector<6x1024xi32>
    %34 = arith.cmpi eq, %1, %33 : vector<6x1024xi32>
    %c5_i32 = arith.constant 5 : i32
    %35 = vector.broadcast %c5_i32 : i32 to vector<6x1024xi32>
    %36 = arith.cmpi eq, %1, %35 : vector<6x1024xi32>
    %37 = arith.ori %34, %36 : vector<6x1024xi1>
    %c0_13 = arith.constant 0 : index
    %c2_14 = arith.constant 2 : index
    %38 = memref.load %arg0[%c0_13, %c2_14] : memref<3x3xf32, #tpu.memory_space<smem>>
    %39 = vector.broadcast %38 : f32 to vector<6x1024xf32>
    %40 = arith.select %37, %39, %26 : vector<6x1024xi1>, vector<6x1024xf32>
    %c1_15 = arith.constant 1 : index
    %c2_16 = arith.constant 2 : index
    %41 = memref.load %arg0[%c1_15, %c2_16] : memref<3x3xf32, #tpu.memory_space<smem>>
    %42 = vector.broadcast %41 : f32 to vector<6x1024xf32>
    %43 = arith.select %37, %42, %29 : vector<6x1024xi1>, vector<6x1024xf32>
    %c2_17 = arith.constant 2 : index
    %c2_18 = arith.constant 2 : index
    %44 = memref.load %arg0[%c2_17, %c2_18] : memref<3x3xf32, #tpu.memory_space<smem>>
    %45 = vector.broadcast %44 : f32 to vector<6x1024xf32>
    %46 = arith.select %37, %45, %32 : vector<6x1024xi1>, vector<6x1024xf32>
    %47 = vector.broadcast %0 : vector<1x1024xf32> to vector<6x1024xf32>
    %48 = arith.mulf %40, %47 : vector<6x1024xf32>
    %49 = math.exp %48 : vector<6x1024xf32>
    %50 = vector.broadcast %0 : vector<1x1024xf32> to vector<6x1024xf32>
    %51 = arith.mulf %43, %50 : vector<6x1024xf32>
    %52 = arith.addf %51, %46 : vector<6x1024xf32>
    %53 = math.cos %52 : vector<6x1024xf32>
    %54 = arith.mulf %49, %53 : vector<6x1024xf32>
    %55 = math.sin %52 : vector<6x1024xf32>
    %56 = arith.mulf %49, %55 : vector<6x1024xf32>
    %c0_19 = arith.constant 0 : index
    %c0_20 = arith.constant 0 : index
    %c0_21 = arith.constant 0 : index
    %57 = vector.load %arg2[%c0_19, %c0_20, %c0_21] : memref<2x6x1024xf32, #tpu.memory_space<vmem>>, vector<1x6x1024xf32>
    %58 = vector.shape_cast %57 : vector<1x6x1024xf32> to vector<6x1024xf32>
    %c1_22 = arith.constant 1 : index
    %c0_23 = arith.constant 0 : index
    %c0_24 = arith.constant 0 : index
    %59 = vector.load %arg2[%c1_22, %c0_23, %c0_24] : memref<2x6x1024xf32, #tpu.memory_space<vmem>>, vector<1x6x1024xf32>
    %60 = vector.shape_cast %59 : vector<1x6x1024xf32> to vector<6x1024xf32>
    %61 = arith.mulf %58, %54 : vector<6x1024xf32>
    %62 = arith.mulf %60, %56 : vector<6x1024xf32>
    %63 = arith.addf %61, %62 : vector<6x1024xf32>
    %c0_25 = arith.constant 0 : index
    %c0_26 = arith.constant 0 : index
    %c0_27 = arith.constant 0 : index
    %64 = vector.load %arg3[%c0_25, %c0_26, %c0_27] : memref<2x6x1024xf32, #tpu.memory_space<vmem>>, vector<1x6x1024xf32>
    %65 = vector.shape_cast %64 : vector<1x6x1024xf32> to vector<6x1024xf32>
    %66 = vector.shape_cast %63 : vector<6x1024xf32> to vector<1x6x1024xf32>
    tpu.vector_store %arg3[%c0_25, %c0_26, %c0_27], %66 {strides = array<i32>} : memref<2x6x1024xf32, #tpu.memory_space<vmem>>, vector<1x6x1024xf32>,
    %67 = arith.mulf %60, %54 : vector<6x1024xf32>
    %68 = arith.mulf %58, %56 : vector<6x1024xf32>
    %69 = arith.subf %67, %68 : vector<6x1024xf32>
    %c1_28 = arith.constant 1 : index
    %c0_29 = arith.constant 0 : index
    %c0_30 = arith.constant 0 : index
    %70 = vector.load %arg3[%c1_28, %c0_29, %c0_30] : memref<2x6x1024xf32, #tpu.memory_space<vmem>>, vector<1x6x1024xf32>
    %71 = vector.shape_cast %70 : vector<1x6x1024xf32> to vector<6x1024xf32>
    %72 = vector.shape_cast %69 : vector<6x1024xf32> to vector<1x6x1024xf32>
    tpu.vector_store %arg3[%c1_28, %c0_29, %c0_30], %72 {strides = array<i32>} : memref<2x6x1024xf32, #tpu.memory_space<vmem>>, vector<1x6x1024xf32>,
    return
  }
}

</mosaic_0001>

<llo_original>
// kernel: reverse.2
$region0: #{reverse.2}
  %s0 = inlined_call_operand.vmem [shape: f32[16,16], index: 0, kind: input, shape index: {}]
  %s1 = inlined_call_operand.vmem [shape: f32[16,16], index: 1, kind: output, shape index: {}]
  %v2 = vlaneseq
  %v3 = vsub.s32 15, %v2
  %4 = vset.pattern.permute.xlu0 %v3
  $region1: #{reverse.2} parent=0
    #allocation0 [shape = 'u8[8192]{0}', space=vmem, size = 0x2000, scoped, tag = 'operand span for operand 0']
    #allocation1 [shape = 'u8[8192]{0}', space=vmem, size = 0x2000, scoped, tag = 'operand span for operand 1']
    // Predicated region
    $region2: #{reverse.2} parent=1 // pred_check
      _
    $region3: #{reverse.2} parent=1 // pred_check_branch
      %6 = sbr.rel (0) target = $region5
    $region4: #{reverse.2} parent=1 // pred_region
      // Predicated region
      $region6: #{reverse.2} parent=4 // pred_check
        _
      $region7: #{reverse.2} parent=4 // pred_check_branch
        %8 = sbr.rel (0) target = $region9
      $region8: #{reverse.2} parent=4 // pred_region
        // Predicated region
        $region21: #{reverse.2} parent=8 // pred_check
          _
        $region22: #{reverse.2} parent=8 // pred_check_branch
          %25 = sbr.rel (0) target = $region24
        $region23: #{reverse.2} parent=8 // pred_region
          loop: start=0, step=1, limit=1
          $region25: #{reverse.2} parent=23 // loop_pre_header
            _
          $region26: #{reverse.2} parent=23 // loop_header
            %s27 = sphi 0, %s31
            %p28 = scmp.ge.s32.totalorder %s27, 1
            %s32 = sphi %s0, %s0
            %s33 = sphi [#allocation0], [#allocation0]
          $region27: #{reverse.2} parent=23 // loop_header_branch
            %30 = sbr.rel (%p28) target = $region31
          $region28: #{reverse.2} parent=23 // loop_body
            %v34 = vld [vmem:[%s32] sm:$0xff]
            %35 = vst [vmem:[%s33] sm:$0xff] %v34
            %v36 = vld [vmem:[%s32 + $0x8] sm:$0xff]
            %37 = vst [vmem:[%s33 + $0x8] sm:$0xff] %v36
          $region29: #{reverse.2} parent=23 // loop_footer
            %s31 = sadd.s32 1, %s27
          $region30: #{reverse.2} parent=23 // loop_footer_branch
            %26 = sbr.rel target = $region26
          $region31: #{reverse.2} parent=23 // loop_exit
            _
        $region24: #{reverse.2} parent=8 // pred_fallthru
          _
        // Predicated region
        $region32: #{reverse.2} parent=8 // pred_check
          _
        $region33: #{reverse.2} parent=8 // pred_check_branch
          %39 = sbr.rel target = $region35
        $region34: #{reverse.2} parent=8 // pred_region
          _
        $region35: #{reverse.2} parent=8 // pred_fallthru
          _
      $region9: #{reverse.2} parent=4 // pred_fallthru
        _
      // Predicated region
      $region10: #{reverse.2} parent=4 // pred_check
        _
      $region11: #{reverse.2} parent=4 // pred_check_branch
        %10 = sbr.rel target = $region13
      $region12: #{reverse.2} parent=4 // pred_region
        loop: start=0, step=1, limit=1
        $region14: #{reverse.2} parent=12 // loop_pre_header
          _
        $region15: #{reverse.2} parent=12 // loop_header
          %s13 = sphi 0, %s17
          %p14 = scmp.ge.s32.totalorder %s13, 1
          %s18 = sphi %s0, %s0
          %s19 = sphi [#allocation0], [#allocation0]
        $region16: #{reverse.2} parent=12 // loop_header_branch
          %16 = sbr.rel (%p14) target = $region20
        $region17: #{reverse.2} parent=12 // loop_body
          %v20 = vld [vmem:[%s18] sm:$0xff]
          %21 = vst [vmem:[%s19] sm:$0xff] %v20
          %v22 = vld [vmem:[%s18 + $0x8] sm:$0xff]
          %23 = vst [vmem:[%s19 + $0x8] sm:$0xff] %v22
        $region18: #{reverse.2} parent=12 // loop_footer
          %s17 = sadd.s32 1, %s13
        $region19: #{reverse.2} parent=12 // loop_footer_branch
          %12 = sbr.rel target = $region15
        $region20: #{reverse.2} parent=12 // loop_exit
          _
      $region13: #{reverse.2} parent=4 // pred_fallthru
        _
    $region5: #{reverse.2} parent=1 // pred_fallthru
      _
    %40 = vnop
    %v41 = vld [vmem:[#allocation0] sm:$0xff]
    %42 = vperm.xlu0 %4, %v41
    %v43 = vpop.permute.xlu0 %42
    %44 = vst [vmem:[#allocation1] sm:$0xff] %v43
    %s45 = scalar_lea.vmem [#allocation1], 8
    %s46 = scalar_lea.vmem [#allocation0], 8
    %v47 = vld [vmem:[%s46] sm:$0xff]
    %48 = vperm.xlu0 %4, %v47
    %v49 = vpop.permute.xlu0 %48
    %50 = vst [vmem:[%s45] sm:$0xff] %v49
    // Predicated region
    $region36: #{reverse.2} parent=1 // pred_check
      _
    $region37: #{reverse.2} parent=1 // pred_check_branch
      %52 = sbr.rel (0) target = $region39
    $region38: #{reverse.2} parent=1 // pred_region
      // Predicated region
      $region40: #{reverse.2} parent=38 // pred_check
        _
      $region41: #{reverse.2} parent=38 // pred_check_branch
        %54 = sbr.rel (0) target = $region43
      $region42: #{reverse.2} parent=38 // pred_region
        // Predicated region
        $region55: #{reverse.2} parent=42 // pred_check
          _
        $region56: #{reverse.2} parent=42 // pred_check_branch
          %71 = sbr.rel (0) target = $region58
        $region57: #{reverse.2} parent=42 // pred_region
          loop: start=0, step=1, limit=1
          $region59: #{reverse.2} parent=57 // loop_pre_header
            _
          $region60: #{reverse.2} parent=57 // loop_header
            %s73 = sphi 0, %s77
            %p74 = scmp.ge.s32.totalorder %s73, 1
            %s78 = sphi [#allocation1], [#allocation1]
            %s79 = sphi %s1, %s1
          $region61: #{reverse.2} parent=57 // loop_header_branch
            %76 = sbr.rel (%p74) target = $region65
          $region62: #{reverse.2} parent=57 // loop_body
            %v80 = vld [vmem:[%s78] sm:$0xff]
            %81 = vst [vmem:[%s79] sm:$0xff] %v80
            %v82 = vld [vmem:[%s78 + $0x8] sm:$0xff]
            %83 = vst [vmem:[%s79 + $0x8] sm:$0xff] %v82
          $region63: #{reverse.2} parent=57 // loop_footer
            %s77 = sadd.s32 1, %s73
          $region64: #{reverse.2} parent=57 // loop_footer_branch
            %72 = sbr.rel target = $region60
          $region65: #{reverse.2} parent=57 // loop_exit
            _
        $region58: #{reverse.2} parent=42 // pred_fallthru
          _
        // Predicated region
        $region66: #{reverse.2} parent=42 // pred_check
          _
        $region67: #{reverse.2} parent=42 // pred_check_branch
          %85 = sbr.rel target = $region69
        $region68: #{reverse.2} parent=42 // pred_region
          _
        $region69: #{reverse.2} parent=42 // pred_fallthru
          _
      $region43: #{reverse.2} parent=38 // pred_fallthru
        _
      // Predicated region
      $region44: #{reverse.2} parent=38 // pred_check
        _
      $region45: #{reverse.2} parent=38 // pred_check_branch
        %56 = sbr.rel target = $region47
      $region46: #{reverse.2} parent=38 // pred_region
        loop: start=0, step=1, limit=1
        $region48: #{reverse.2} parent=46 // loop_pre_header
          _
        $region49: #{reverse.2} parent=46 // loop_header
          %s59 = sphi 0, %s63
          %p60 = scmp.ge.s32.totalorder %s59, 1
          %s64 = sphi [#allocation1], [#allocation1]
          %s65 = sphi %s1, %s1
        $region50: #{reverse.2} parent=46 // loop_header_branch
          %62 = sbr.rel (%p60) target = $region54
        $region51: #{reverse.2} parent=46 // loop_body
          %v66 = vld [vmem:[%s64] sm:$0xff]
          %67 = vst [vmem:[%s65] sm:$0xff] %v66
          %v68 = vld [vmem:[%s64 + $0x8] sm:$0xff]
          %69 = vst [vmem:[%s65 + $0x8] sm:$0xff] %v68
        $region52: #{reverse.2} parent=46 // loop_footer
          %s63 = sadd.s32 1, %s59
        $region53: #{reverse.2} parent=46 // loop_footer_branch
          %58 = sbr.rel target = $region49
        $region54: #{reverse.2} parent=46 // loop_exit
          _
      $region47: #{reverse.2} parent=38 // pred_fallthru
        _
    $region39: #{reverse.2} parent=1 // pred_fallthru
      _
    %86 = vnop

// kernel: rank_x_hologram_forward.1
$region0: #{rank_x_hologram_forward.1}
  #allocation0 [shape = 'u32[]', space=smem, size = 0x4, offset = 0x4, fixed_abs, tag = 'smem constant byte address 0x4 - core index']
  #allocation1 [shape = 'u32[144,128]{1,0:T(1,128)}', space=vmem, size = 0x12000, scoped, tag = 'internal scratch']
  %s0 = inlined_call_operand.vmem [shape: f32[3,3], index: 0, kind: input, shape index: {}]
  %s1 = inlined_call_operand.vmem [shape: f32[1,1024], index: 1, kind: input, shape index: {}]
  %s2 = inlined_call_operand.vmem [shape: f32[2,6,1024], index: 2, kind: input, shape index: {}]
  %s3 = inlined_call_operand.vmem [shape: f32[2,6,1024], index: 3, kind: output, shape index: {}]
  %s4 = sld [smem:[#allocation0]]
  $region26: #{rank_x_hologram_forward.1} parent=0
    _
  %s6 = ssub.s32 1, %s4
  %s7 = scalar_select 0, %s6, %s4
  $region1: #{rank_x_hologram_forward.1} parent=0
    #allocation2 [shape = 'u8[2048]{0}', space=smem, size = 0x800, scoped, tag = 'input window, operand 0, single buffered']
    #allocation3 [shape = 's32[1]{0}', space=sflag, size = 0x4, scoped, tag = 'scoped memory for rank_x_hologram_forward.1']
    %8 = vsyncpa [#allocation3], 0
    // Predicated region
    $region2: #{rank_x_hologram_forward.1} parent=1 // pred_check
      _
    $region3: #{rank_x_hologram_forward.1} parent=1 // pred_check_branch
      %10 = sbr.rel (0) target = $region5
    $region4: #{rank_x_hologram_forward.1} parent=1 // pred_region
      %s12 = ssub.s32 64, 64
      %13 = vsyncadd [#allocation3], %s12
      %s15 = sshll.u32 %s0, 4
      %s16 = int_to_ptr.vmem [resolvable:$true] %s15
      %18 = dma.vmem_to_smem %s16, 64, [#allocation2], [#allocation3]
    $region5: #{rank_x_hologram_forward.1} parent=1 // pred_fallthru
      _
    // Predicated region
    $region6: #{rank_x_hologram_forward.1} parent=1 // pred_check
      _
    $region7: #{rank_x_hologram_forward.1} parent=1 // pred_check_branch
      %20 = sbr.rel (0) target = $region9
    $region8: #{rank_x_hologram_forward.1} parent=1 // pred_region
      _
    $region9: #{rank_x_hologram_forward.1} parent=1 // pred_fallthru
      _
    // Predicated region
    $region10: #{rank_x_hologram_forward.1} parent=1 // pred_check
      _
    $region11: #{rank_x_hologram_forward.1} parent=1 // pred_check_branch
      %22 = sbr.rel (0) target = $region13
    $region12: #{rank_x_hologram_forward.1} parent=1 // pred_region
      _
    $region13: #{rank_x_hologram_forward.1} parent=1 // pred_fallthru
      _
    // Predicated region
    $region14: #{rank_x_hologram_forward.1} parent=1 // pred_check
      _
    $region15: #{rank_x_hologram_forward.1} parent=1 // pred_check_branch
      %24 = sbr.rel (0) target = $region17
    $region16: #{rank_x_hologram_forward.1} parent=1 // pred_region
      %25 = dma.done [#allocation3], 64
    $region17: #{rank_x_hologram_forward.1} parent=1 // pred_fallthru
      _
    %26 = sfence
    %v27 = vld [vmem:[%s1] sm:$0xff]
    %v28 = vlaneseq
    %v29 = vshrl.u32 %v28, 7
    %vm30 = vcmp.eq.s32.totalorder %v29, 0
    %vm31 = vcmp.eq.s32.totalorder %v29, 3
    %vm32 = vmor %vm30, %vm31
    %s33 = sld [smem:[#allocation2]]
    %v34 = vstv %s33
    %v35 = vsel %vm32, %v34, 0.0
    %s36 = sld [smem:[#allocation2 + $0x80]]
    %v37 = vstv %s36
    %v38 = vsel %vm32, %v37, 0.0
    %s39 = sld [smem:[#allocation2 + $0x100]]
    %v40 = vstv %s39
    %v41 = vsel %vm32, %v40, 0.0
    %vm42 = vcmp.eq.s32.totalorder %v29, 1
    %vm43 = vcmp.eq.s32.totalorder %v29, 4
    %vm44 = vmor %vm42, %vm43
    %s45 = sld [smem:[#allocation2 + $0x1]]
    %v46 = vstv %s45
    %v47 = vsel %vm44, %v46, %v35
    %s48 = sld [smem:[#allocation2 + $0x81]]
    %v49 = vstv %s48
    %v50 = vsel %vm44, %v49, %v38
    %s51 = sld [smem:[#allocation2 + $0x101]]
    %v52 = vstv %s51
    %v53 = vsel %vm44, %v52, %v41
    %vm54 = vcmp.eq.s32.totalorder %v29, 2
    %vm55 = vcmp.eq.s32.totalorder %v29, 5
    %vm56 = vmor %vm54, %vm55
    %s57 = sld [smem:[#allocation2 + $0x2]]
    %v58 = vstv %s57
    %v59 = vsel %vm56, %v58, %v47
    %s60 = sld [smem:[#allocation2 + $0x82]]
    %v61 = vstv %s60
    %v62 = vsel %vm56, %v61, %v50
    %s63 = sld [smem:[#allocation2 + $0x102]]
    %v64 = vstv %s63
    %v65 = vsel %vm56, %v64, %v53
    %v67 = vlaneseq
    %v68 = vshrl.u32 %v67, 7
    %v69 = vsub.s32 0, %v68
    %v70 = vrot.slane %v27, %v69
    %v71 = vlaneseq
    %v72 = vshrl.u32 %v71, 7
    %v73 = vsub.s32 1, %v72
    %v74 = vrot.slane %v27, %v73
    %v75 = vlaneseq
    %v76 = vshrl.u32 %v75, 7
    %v77 = vsub.s32 2, %v76
    %v78 = vrot.slane %v27, %v77
    %v79 = vlaneseq
    %v80 = vshrl.u32 %v79, 7
    %v81 = vsub.s32 3, %v80
    %v82 = vrot.slane %v27, %v81
    %v83 = vlaneseq
    %v84 = vshrl.u32 %v83, 7
    %v85 = vsub.s32 4, %v84
    %v86 = vrot.slane %v27, %v85
    %v87 = vlaneseq
    %v88 = vshrl.u32 %v87, 7
    %v89 = vsub.s32 5, %v88
    %v90 = vrot.slane %v27, %v89
    %v91 = vlaneseq
    %v92 = vshrl.u32 %v91, 7
    %v93 = vsub.s32 6, %v92
    %v94 = vrot.slane %v27, %v93
    %v95 = vlaneseq
    %v96 = vshrl.u32 %v95, 7
    %v97 = vsub.s32 7, %v96
    %v98 = vrot.slane %v27, %v97
    %v107 = vmul.f32 %v59, %v70
    %v108 = vmul.f32 %v59, %v74
    %v109 = vmul.f32 %v59, %v78
    %v110 = vmul.f32 %v59, %v82
    %v111 = vmul.f32 %v59, %v86
    %v112 = vmul.f32 %v59, %v90
    %v113 = vmul.f32 %v59, %v94
    %v114 = vmul.f32 %v59, %v98
    %v115 = vmul.f32 %v107, 1.442695
    %v116 = vpow.pop %v115
    %v117 = vmul.f32 %v108, 1.442695
    %v118 = vpow.pop %v117
    %v119 = vmul.f32 %v109, 1.442695
    %v120 = vpow.pop %v119
    %v121 = vmul.f32 %v110, 1.442695
    %v122 = vpow.pop %v121
    %v123 = vmul.f32 %v111, 1.442695
    %v124 = vpow.pop %v123
    %v125 = vmul.f32 %v112, 1.442695
    %v126 = vpow.pop %v125
    %v127 = vmul.f32 %v113, 1.442695
    %v128 = vpow.pop %v127
    %v129 = vmul.f32 %v114, 1.442695
    %v130 = vpow.pop %v129
    %v131 = vmul.f32 %v62, %v70
    %v132 = vmul.f32 %v62, %v74
    %v133 = vmul.f32 %v62, %v78
    %v134 = vmul.f32 %v62, %v82
    %v135 = vmul.f32 %v62, %v86
    %v136 = vmul.f32 %v62, %v90
    %v137 = vmul.f32 %v62, %v94
    %v138 = vmul.f32 %v62, %v98
    %v139 = vadd.f32 %v131, %v65
    %v140 = vadd.f32 %v132, %v65
    %v141 = vadd.f32 %v133, %v65
    %v142 = vadd.f32 %v134, %v65
    %v143 = vadd.f32 %v135, %v65
    %v144 = vadd.f32 %v136, %v65
    %v145 = vadd.f32 %v137, %v65
    %v146 = vadd.f32 %v138, %v65
    %v147 = vand.u32 2147483647, %v139
    %vm148 = vcmp.le.f32.partialorder %v147, 0.7853982
    %vm149 = vcmp.lt.s32.totalorder %v139, 0
    %v150 = vand.u32 %v139, 2139095040
    %v151 = vshrl.u32 %v150, 23
    %v152 = vsub.s32 %v151, 127
    %v153 = vand.u32 2147483647, %v139
    %v154 = vand.u32 %v153, 8388607
    %v155 = vor.u32 %v154, 8388608
    %v156 = vsub.s32 0, %v155
    %v157 = vadd.s32 %v152, 1
    %vm158 = vcmp.gt.s32.totalorder %v157, 0
    %v159 = vsel %vm158, %v157, 0
    %v160 = vshrl.u32 %v159, 5
    %v161 = vand.u32 %v159, 31
    %v162 = vsub.s32 32, %v161
    %v163 = vshrl.u32 683565275, %v162
    %v164 = vshll.u32 683565275, %v161
    %v165 = vshrl.u32 2475754826, %v162
    %v166 = vor.u32 %v164, %v165
    %v167 = vshll.u32 2475754826, %v161
    %v168 = vshrl.u32 2131351028, %v162
    %v169 = vor.u32 %v167, %v168
    %v170 = vshll.u32 2131351028, %v161
    %v171 = vshrl.u32 2102212464, %v162
    %v172 = vor.u32 %v170, %v171
    %v173 = vshll.u32 2102212464, %v161
    %v174 = vshrl.u32 920167782, %v162
    %v175 = vor.u32 %v173, %v174
    %v176 = vshll.u32 920167782, %v161
    %v177 = vshrl.u32 1326507024, %v162
    %v178 = vor.u32 %v176, %v177
    %vm179 = vcmp.lt.s32.totalorder %v160, 1
    %vm180 = vcmp.lt.s32.totalorder %v160, 2
    %vm181 = vcmp.lt.s32.totalorder %v160, 3
    %vm182 = vcmp.lt.s32.totalorder %v160, 4
    %v183 = vsel %vm179, %v163, %v166
    %v184 = vsel %vm182, %v172, 2102212464
    %v185 = vsel %vm181, %v169, %v184
    %v186 = vsel %vm180, %v183, %v185
    %v187 = vsel %vm179, %v166, %v169
    %v188 = vsel %vm182, %v175, 920167782
    %v189 = vsel %vm181, %v172, %v188
    %v190 = vsel %vm180, %v187, %v189
    %v191 = vsel %vm179, %v169, %v172
    %v192 = vsel %vm182, %v178, 1326507024
    %v193 = vsel %vm181, %v175, %v192
    %v194 = vsel %vm180, %v191, %v193
    %v195 = vshll.u32 %v155, 8
    %v196 = vmul.u32.u64.compose %v195, %v194
    %v197 = vextract.low.u32 %v196
    %v198 = vextract.high.u32 %v196
    %v199 = vmul.u32.u64.compose %v195, %v190
    %v200 = vextract.low.u32 %v199
    %v201 = vextract.high.u32 %v199
    %v202 = vmul.u32 %v195, %v186
    %v203 = vadd.s32 %v198, %v200
    %vm204 = vc.u32 %v198, %v200
    %v205 = vadd.s32 %v201, 1
    %v206 = vsel %vm204, %v205, %v201
    %v207 = vadd.s32 %v202, %v206
    %v208 = vadd.s32 %v207, 536870912
    %v209 = vshrl.u32 %v208, 30
    %v210 = vshll.u32 %v209, 30
    %v211 = vsub.s32 %v207, %v210
    %vm212 = vcmp.lt.s32.totalorder %v211, 0
    %v213 = vsub.s32 0, %v211
    %v214 = vsel %vm212, %v213, %v211
    %v215 = vclz %v214
    %v216 = vsub.s32 %v215, 2
    %vm217 = vcmp.gt.s32.totalorder 0, %v216
    %v218 = vsel %vm217, 0, %v216
    %v219 = vsub.s32 32, %v218
    %v220 = vshll.u32 %v211, %v218
    %v221 = vshrl.u32 %v203, %v219
    %v222 = vor.u32 %v220, %v221
    %v223 = vsub.s32 4294967266, %v218
    %v224 = vadd.s32 %v223, 127
    %v225 = vshll.u32 %v224, 23
    %v226 = vor.u32 4788187, %v225
    %v227 = vand.u32 2147483647, %v226
    %v229 = vcvt.s32.f32 %v222
    %v230 = vmul.f32 %v229, %v227
    %v231 = vxor.u32 %v230, 2147483648
    %v232 = vsel %vm149, %v231, %v230
    %v233 = vsub.s32 4, %v209
    %v234 = vsel %vm149, %v233, %v209
    %v235 = vsel %vm148, %v139, %v232
    %v236 = vsel %vm148, 0, %v234
    %v237 = vcosq.f32.pop %v235
    %v238 = vsinq.f32.pop %v235
    %vm239 = vweird.f32 %v139
    %v240 = vand.u32 %v236, 3
    %vm241 = vcmp.lt.s32.totalorder %v240, 2
    %vm242 = vcmp.eq.s32.totalorder %v240, 0
    %v243 = vxor.u32 %v238, 2147483648
    %v244 = vsel %vm242, %v237, %v243
    %vm245 = vcmp.eq.s32.totalorder %v240, 2
    %v246 = vxor.u32 %v237, 2147483648
    %v247 = vsel %vm245, %v246, %v238
    %v248 = vsel %vm241, %v244, %v247
    %v249 = vsel %vm239, nan, %v248
    %v250 = vand.u32 2147483647, %v140
    %vm251 = vcmp.le.f32.partialorder %v250, 0.7853982
    %vm252 = vcmp.lt.s32.totalorder %v140, 0
    %v253 = vand.u32 %v140, 2139095040
    %v254 = vshrl.u32 %v253, 23
    %v255 = vsub.s32 %v254, 127
    %v256 = vand.u32 2147483647, %v140
    %v257 = vand.u32 %v256, 8388607
    %v258 = vor.u32 %v257, 8388608
    %v259 = vsub.s32 0, %v258
    %v260 = vadd.s32 %v255, 1
    %vm261 = vcmp.gt.s32.totalorder %v260, 0
    %v262 = vsel %vm261, %v260, 0
    %v263 = vshrl.u32 %v262, 5
    %v264 = vand.u32 %v262, 31
    %v265 = vsub.s32 32, %v264
    %v266 = vshrl.u32 683565275, %v265
    %v267 = vshll.u32 683565275, %v264
    %v268 = vshrl.u32 2475754826, %v265
    %v269 = vor.u32 %v267, %v268
    %v270 = vshll.u32 2475754826, %v264
    %v271 = vshrl.u32 2131351028, %v265
    %v272 = vor.u32 %v270, %v271
    %v273 = vshll.u32 2131351028, %v264
    %v274 = vshrl.u32 2102212464, %v265
    %v275 = vor.u32 %v273, %v274
    %v276 = vshll.u32 2102212464, %v264
    %v277 = vshrl.u32 920167782, %v265
    %v278 = vor.u32 %v276, %v277
    %v279 = vshll.u32 920167782, %v264
    %v280 = vshrl.u32 1326507024, %v265
    %v281 = vor.u32 %v279, %v280
    %vm282 = vcmp.lt.s32.totalorder %v263, 1
    %vm283 = vcmp.lt.s32.totalorder %v263, 2
    %vm284 = vcmp.lt.s32.totalorder %v263, 3
    %vm285 = vcmp.lt.s32.totalorder %v263, 4
    %v286 = vsel %vm282, %v266, %v269
    %v287 = vsel %vm285, %v275, 2102212464
    %v288 = vsel %vm284, %v272, %v287
    %v289 = vsel %vm283, %v286, %v288
    %v290 = vsel %vm282, %v269, %v272
    %v291 = vsel %vm285, %v278, 920167782
    %v292 = vsel %vm284, %v275, %v291
    %v293 = vsel %vm283, %v290, %v292
    %v294 = vsel %vm282, %v272, %v275
    %v295 = vsel %vm285, %v281, 1326507024
    %v296 = vsel %vm284, %v278, %v295
    %v297 = vsel %vm283, %v294, %v296
    %v298 = vshll.u32 %v258, 8
    %v299 = vmul.u32.u64.compose %v298, %v297
    %v300 = vextract.low.u32 %v299
    %v301 = vextract.high.u32 %v299
    %v302 = vmul.u32.u64.compose %v298, %v293
    %v303 = vextract.low.u32 %v302
    %v304 = vextract.high.u32 %v302
    %v305 = vmul.u32 %v298, %v289
    %v306 = vadd.s32 %v301, %v303
    %vm307 = vc.u32 %v301, %v303
    %v308 = vadd.s32 %v304, 1
    %v309 = vsel %vm307, %v308, %v304
    %v310 = vadd.s32 %v305, %v309
    %v311 = vadd.s32 %v310, 536870912
    %v312 = vshrl.u32 %v311, 30
    %v313 = vshll.u32 %v312, 30
    %v314 = vsub.s32 %v310, %v313
    %vm315 = vcmp.lt.s32.totalorder %v314, 0
    %v316 = vsub.s32 0, %v314
    %v317 = vsel %vm315, %v316, %v314
    %v318 = vclz %v317
    %v319 = vsub.s32 %v318, 2
    %vm320 = vcmp.gt.s32.totalorder 0, %v319
    %v321 = vsel %vm320, 0, %v319
    %v322 = vsub.s32 32, %v321
    %v323 = vshll.u32 %v314, %v321
    %v324 = vshrl.u32 %v306, %v322
    %v325 = vor.u32 %v323, %v324
    %v326 = vsub.s32 4294967266, %v321
    %v327 = vadd.s32 %v326, 127
    %v328 = vshll.u32 %v327, 23
    %v329 = vor.u32 4788187, %v328
    %v330 = vand.u32 2147483647, %v329
    %v332 = vcvt.s32.f32 %v325
    %v333 = vmul.f32 %v332, %v330
    %v334 = vxor.u32 %v333, 2147483648
    %v335 = vsel %vm252, %v334, %v333
    %v336 = vsub.s32 4, %v312
    %v337 = vsel %vm252, %v336, %v312
    %v338 = vsel %vm251, %v140, %v335
    %v339 = vsel %vm251, 0, %v337
    %v340 = vcosq.f32.pop %v338
    %v341 = vsinq.f32.pop %v338
    %vm342 = vweird.f32 %v140
    %v343 = vand.u32 %v339, 3
    %vm344 = vcmp.lt.s32.totalorder %v343, 2
    %vm345 = vcmp.eq.s32.totalorder %v343, 0
    %v346 = vxor.u32 %v341, 2147483648
    %v347 = vsel %vm345, %v340, %v346
    %vm348 = vcmp.eq.s32.totalorder %v343, 2
    %v349 = vxor.u32 %v340, 2147483648
    %v350 = vsel %vm348, %v349, %v341
    %v351 = vsel %vm344, %v347, %v350
    %v352 = vsel %vm342, nan, %v351
    %v353 = vand.u32 2147483647, %v141
    %vm354 = vcmp.le.f32.partialorder %v353, 0.7853982
    %vm355 = vcmp.lt.s32.totalorder %v141, 0
    %v356 = vand.u32 %v141, 2139095040
    %v357 = vshrl.u32 %v356, 23
    %v358 = vsub.s32 %v357, 127
    %v359 = vand.u32 2147483647, %v141
    %v360 = vand.u32 %v359, 8388607
    %v361 = vor.u32 %v360, 8388608
    %v362 = vsub.s32 0, %v361
    %v363 = vadd.s32 %v358, 1
    %vm364 = vcmp.gt.s32.totalorder %v363, 0
    %v365 = vsel %vm364, %v363, 0
    %v366 = vshrl.u32 %v365, 5
    %v367 = vand.u32 %v365, 31
    %v368 = vsub.s32 32, %v367
    %v369 = vshrl.u32 683565275, %v368
    %v370 = vshll.u32 683565275, %v367
    %v371 = vshrl.u32 2475754826, %v368
    %v372 = vor.u32 %v370, %v371
    %v373 = vshll.u32 2475754826, %v367
    %v374 = vshrl.u32 2131351028, %v368
    %v375 = vor.u32 %v373, %v374
    %v376 = vshll.u32 2131351028, %v367
    %v377 = vshrl.u32 2102212464, %v368
    %v378 = vor.u32 %v376, %v377
    %v379 = vshll.u32 2102212464, %v367
    %v380 = vshrl.u32 920167782, %v368
    %v381 = vor.u32 %v379, %v380
    %v382 = vshll.u32 920167782, %v367
    %v383 = vshrl.u32 1326507024, %v368
    %v384 = vor.u32 %v382, %v383
    %vm385 = vcmp.lt.s32.totalorder %v366, 1
    %vm386 = vcmp.lt.s32.totalorder %v366, 2
    %vm387 = vcmp.lt.s32.totalorder %v366, 3
    %vm388 = vcmp.lt.s32.totalorder %v366, 4
    %v389 = vsel %vm385, %v369, %v372
    %v390 = vsel %vm388, %v378, 2102212464
    %v391 = vsel %vm387, %v375, %v390
    %v392 = vsel %vm386, %v389, %v391
    %v393 = vsel %vm385, %v372, %v375
    %v394 = vsel %vm388, %v381, 920167782
    %v395 = vsel %vm387, %v378, %v394
    %v396 = vsel %vm386, %v393, %v395
    %v397 = vsel %vm385, %v375, %v378
    %v398 = vsel %vm388, %v384, 1326507024
    %v399 = vsel %vm387, %v381, %v398
    %v400 = vsel %vm386, %v397, %v399
    %v401 = vshll.u32 %v361, 8
    %v402 = vmul.u32.u64.compose %v401, %v400
    %v403 = vextract.low.u32 %v402
    %v404 = vextract.high.u32 %v402
    %v405 = vmul.u32.u64.compose %v401, %v396
    %v406 = vextract.low.u32 %v405
    %v407 = vextract.high.u32 %v405
    %v408 = vmul.u32 %v401, %v392
    %v409 = vadd.s32 %v404, %v406
    %vm410 = vc.u32 %v404, %v406
    %v411 = vadd.s32 %v407, 1
    %v412 = vsel %vm410, %v411, %v407
    %v413 = vadd.s32 %v408, %v412
    %v414 = vadd.s32 %v413, 536870912
    %v415 = vshrl.u32 %v414, 30
    %v416 = vshll.u32 %v415, 30
    %v417 = vsub.s32 %v413, %v416
    %vm418 = vcmp.lt.s32.totalorder %v417, 0
    %v419 = vsub.s32 0, %v417
    %v420 = vsel %vm418, %v419, %v417
    %v421 = vclz %v420
    %v422 = vsub.s32 %v421, 2
    %vm423 = vcmp.gt.s32.totalorder 0, %v422
    %v424 = vsel %vm423, 0, %v422
    %v425 = vsub.s32 32, %v424
    %v426 = vshll.u32 %v417, %v424
    %v427 = vshrl.u32 %v409, %v425
    %v428 = vor.u32 %v426, %v427
    %v429 = vsub.s32 4294967266, %v424
    %v430 = vadd.s32 %v429, 127
    %v431 = vshll.u32 %v430, 23
    %v432 = vor.u32 4788187, %v431
    %v433 = vand.u32 2147483647, %v432
    %v435 = vcvt.s32.f32 %v428
    %v436 = vmul.f32 %v435, %v433
    %v437 = vxor.u32 %v436, 2147483648
    %v438 = vsel %vm355, %v437, %v436
    %v439 = vsub.s32 4, %v415
    %v440 = vsel %vm355, %v439, %v415
    %v441 = vsel %vm354, %v141, %v438
    %v442 = vsel %vm354, 0, %v440
    %v443 = vcosq.f32.pop %v441
    %v444 = vsinq.f32.pop %v441
    %vm445 = vweird.f32 %v141
    %v446 = vand.u32 %v442, 3
    %vm447 = vcmp.lt.s32.totalorder %v446, 2
    %vm448 = vcmp.eq.s32.totalorder %v446, 0
    %v449 = vxor.u32 %v444, 2147483648
    %v450 = vsel %vm448, %v443, %v449
    %vm451 = vcmp.eq.s32.totalorder %v446, 2
    %v452 = vxor.u32 %v443, 2147483648
    %v453 = vsel %vm451, %v452, %v444
    %v454 = vsel %vm447, %v450, %v453
    %v455 = vsel %vm445, nan, %v454
    %v456 = vand.u32 2147483647, %v142
    %vm457 = vcmp.le.f32.partialorder %v456, 0.7853982
    %vm458 = vcmp.lt.s32.totalorder %v142, 0
    %v459 = vand.u32 %v142, 2139095040
    %v460 = vshrl.u32 %v459, 23
    %v461 = vsub.s32 %v460, 127
    %v462 = vand.u32 2147483647, %v142
    %v463 = vand.u32 %v462, 8388607
    %v464 = vor.u32 %v463, 8388608
    %v465 = vsub.s32 0, %v464
    %v466 = vadd.s32 %v461, 1
    %vm467 = vcmp.gt.s32.totalorder %v466, 0
    %v468 = vsel %vm467, %v466, 0
    %v469 = vshrl.u32 %v468, 5
    %v470 = vand.u32 %v468, 31
    %v471 = vsub.s32 32, %v470
    %v472 = vshrl.u32 683565275, %v471
    %v473 = vshll.u32 683565275, %v470
    %v474 = vshrl.u32 2475754826, %v471
    %v475 = vor.u32 %v473, %v474
    %v476 = vshll.u32 2475754826, %v470
    %v477 = vshrl.u32 2131351028, %v471
    %v478 = vor.u32 %v476, %v477
    %v479 = vshll.u32 2131351028, %v470
    %v480 = vshrl.u32 2102212464, %v471
    %v481 = vor.u32 %v479, %v480
    %v482 = vshll.u32 2102212464, %v470
    %v483 = vshrl.u32 920167782, %v471
    %v484 = vor.u32 %v482, %v483
    %v485 = vshll.u32 920167782, %v470
    %v486 = vshrl.u32 1326507024, %v471
    %v487 = vor.u32 %v485, %v486
    %vm488 = vcmp.lt.s32.totalorder %v469, 1
    %vm489 = vcmp.lt.s32.totalorder %v469, 2
    %vm490 = vcmp.lt.s32.totalorder %v469, 3
    %vm491 = vcmp.lt.s32.totalorder %v469, 4
    %v492 = vsel %vm488, %v472, %v475
    %v493 = vsel %vm491, %v481, 2102212464
    %v494 = vsel %vm490, %v478, %v493
    %v495 = vsel %vm489, %v492, %v494
    %v496 = vsel %vm488, %v475, %v478
    %v497 = vsel %vm491, %v484, 920167782
    %v498 = vsel %vm490, %v481, %v497
    %v499 = vsel %vm489, %v496, %v498
    %v500 = vsel %vm488, %v478, %v481
    %v501 = vsel %vm491, %v487, 1326507024
    %v502 = vsel %vm490, %v484, %v501
    %v503 = vsel %vm489, %v500, %v502
    %v504 = vshll.u32 %v464, 8
    %v505 = vmul.u32.u64.compose %v504, %v503
    %v506 = vextract.low.u32 %v505
    %v507 = vextract.high.u32 %v505
    %v508 = vmul.u32.u64.compose %v504, %v499
    %v509 = vextract.low.u32 %v508
    %v510 = vextract.high.u32 %v508
    %v511 = vmul.u32 %v504, %v495
    %v512 = vadd.s32 %v507, %v509
    %vm513 = vc.u32 %v507, %v509
    %v514 = vadd.s32 %v510, 1
    %v515 = vsel %vm513, %v514, %v510
    %v516 = vadd.s32 %v511, %v515
    %v517 = vadd.s32 %v516, 536870912
    %v518 = vshrl.u32 %v517, 30
    %v519 = vshll.u32 %v518, 30
    %v520 = vsub.s32 %v516, %v519
    %vm521 = vcmp.lt.s32.totalorder %v520, 0
    %v522 = vsub.s32 0, %v520
    %v523 = vsel %vm521, %v522, %v520
    %v524 = vclz %v523
    %v525 = vsub.s32 %v524, 2
    %vm526 = vcmp.gt.s32.totalorder 0, %v525
    %v527 = vsel %vm526, 0, %v525
    %v528 = vsub.s32 32, %v527
    %v529 = vshll.u32 %v520, %v527
    %v530 = vshrl.u32 %v512, %v528
    %v531 = vor.u32 %v529, %v530
    %v532 = vsub.s32 4294967266, %v527
    %v533 = vadd.s32 %v532, 127
    %v534 = vshll.u32 %v533, 23
    %v535 = vor.u32 4788187, %v534
    %v536 = vand.u32 2147483647, %v535
    %v538 = vcvt.s32.f32 %v531
    %v539 = vmul.f32 %v538, %v536
    %v540 = vxor.u32 %v539, 2147483648
    %v541 = vsel %vm458, %v540, %v539
    %v542 = vsub.s32 4, %v518
    %v543 = vsel %vm458, %v542, %v518
    %v544 = vsel %vm457, %v142, %v541
    %v545 = vsel %vm457, 0, %v543
    %v546 = vcosq.f32.pop %v544
    %v547 = vsinq.f32.pop %v544
    %vm548 = vweird.f32 %v142
    %v549 = vand.u32 %v545, 3
    %vm550 = vcmp.lt.s32.totalorder %v549, 2
    %vm551 = vcmp.eq.s32.totalorder %v549, 0
    %v552 = vxor.u32 %v547, 2147483648
    %v553 = vsel %vm551, %v546, %v552
    %vm554 = vcmp.eq.s32.totalorder %v549, 2
    %v555 = vxor.u32 %v546, 2147483648
    %v556 = vsel %vm554, %v555, %v547
    %v557 = vsel %vm550, %v553, %v556
    %v558 = vsel %vm548, nan, %v557
    %v559 = vand.u32 2147483647, %v143
    %vm560 = vcmp.le.f32.partialorder %v559, 0.7853982
    %vm561 = vcmp.lt.s32.totalorder %v143, 0
    %v562 = vand.u32 %v143, 2139095040
    %v563 = vshrl.u32 %v562, 23
    %v564 = vsub.s32 %v563, 127
    %v565 = vand.u32 2147483647, %v143
    %v566 = vand.u32 %v565, 8388607
    %v567 = vor.u32 %v566, 8388608
    %v568 = vsub.s32 0, %v567
    %v569 = vadd.s32 %v564, 1
    %vm570 = vcmp.gt.s32.totalorder %v569, 0
    %v571 = vsel %vm570, %v569, 0
    %v572 = vshrl.u32 %v571, 5
    %v573 = vand.u32 %v571, 31
    %v574 = vsub.s32 32, %v573
    %v575 = vshrl.u32 683565275, %v574
    %v576 = vshll.u32 683565275, %v573
    %v577 = vshrl.u32 2475754826, %v574
    %v578 = vor.u32 %v576, %v577
    %v579 = vshll.u32 2475754826, %v573
    %v580 = vshrl.u32 2131351028, %v574
    %v581 = vor.u32 %v579, %v580
    %v582 = vshll.u32 2131351028, %v573
    %v583 = vshrl.u32 2102212464, %v574
    %v584 = vor.u32 %v582, %v583
    %v585 = vshll.u32 2102212464, %v573
    %v586 = vshrl.u32 920167782, %v574
    %v587 = vor.u32 %v585, %v586
    %v588 = vshll.u32 920167782, %v573
    %v589 = vshrl.u32 1326507024, %v574
    %v590 = vor.u32 %v588, %v589
    %vm591 = vcmp.lt.s32.totalorder %v572, 1
    %vm592 = vcmp.lt.s32.totalorder %v572, 2
    %vm593 = vcmp.lt.s32.totalorder %v572, 3
    %vm594 = vcmp.lt.s32.totalorder %v572, 4
    %v595 = vsel %vm591, %v575, %v578
    %v596 = vsel %vm594, %v584, 2102212464
    %v597 = vsel %vm593, %v581, %v596
    %v598 = vsel %vm592, %v595, %v597
    %v599 = vsel %vm591, %v578, %v581
    %v600 = vsel %vm594, %v587, 920167782
    %v601 = vsel %vm593, %v584, %v600
    %v602 = vsel %vm592, %v599, %v601
    %v603 = vsel %vm591, %v581, %v584
    %v604 = vsel %vm594, %v590, 1326507024
    %v605 = vsel %vm593, %v587, %v604
    %v606 = vsel %vm592, %v603, %v605
    %v607 = vshll.u32 %v567, 8
    %v608 = vmul.u32.u64.compose %v607, %v606
    %v609 = vextract.low.u32 %v608
    %v610 = vextract.high.u32 %v608
    %v611 = vmul.u32.u64.compose %v607, %v602
    %v612 = vextract.low.u32 %v611
    %v613 = vextract.high.u32 %v611
    %v614 = vmul.u32 %v607, %v598
    %v615 = vadd.s32 %v610, %v612
    %vm616 = vc.u32 %v610, %v612
    %v617 = vadd.s32 %v613, 1
    %v618 = vsel %vm616, %v617, %v613
    %v619 = vadd.s32 %v614, %v618
    %v620 = vadd.s32 %v619, 536870912
    %v621 = vshrl.u32 %v620, 30
    %v622 = vshll.u32 %v621, 30
    %v623 = vsub.s32 %v619, %v622
    %vm624 = vcmp.lt.s32.totalorder %v623, 0
    %v625 = vsub.s32 0, %v623
    %v626 = vsel %vm624, %v625, %v623
    %v627 = vclz %v626
    %v628 = vsub.s32 %v627, 2
    %vm629 = vcmp.gt.s32.totalorder 0, %v628
    %v630 = vsel %vm629, 0, %v628
    %v631 = vsub.s32 32, %v630
    %v632 = vshll.u32 %v623, %v630
    %v633 = vshrl.u32 %v615, %v631
    %v634 = vor.u32 %v632, %v633
    %v635 = vsub.s32 4294967266, %v630
    %v636 = vadd.s32 %v635, 127
    %v637 = vshll.u32 %v636, 23
    %v638 = vor.u32 4788187, %v637
    %v639 = vand.u32 2147483647, %v638
    %v641 = vcvt.s32.f32 %v634
    %v642 = vmul.f32 %v641, %v639
    %v643 = vxor.u32 %v642, 2147483648
    %v644 = vsel %vm561, %v643, %v642
    %v645 = vsub.s32 4, %v621
    %v646 = vsel %vm561, %v645, %v621
    %v647 = vsel %vm560, %v143, %v644
    %v648 = vsel %vm560, 0, %v646
    %v649 = vcosq.f32.pop %v647
    %v650 = vsinq.f32.pop %v647
    %vm651 = vweird.f32 %v143
    %v652 = vand.u32 %v648, 3
    %vm653 = vcmp.lt.s32.totalorder %v652, 2
    %vm654 = vcmp.eq.s32.totalorder %v652, 0
    %v655 = vxor.u32 %v650, 2147483648
    %v656 = vsel %vm654, %v649, %v655
    %vm657 = vcmp.eq.s32.totalorder %v652, 2
    %v658 = vxor.u32 %v649, 2147483648
    %v659 = vsel %vm657, %v658, %v650
    %v660 = vsel %vm653, %v656, %v659
    %v661 = vsel %vm651, nan, %v660
    %v662 = vand.u32 2147483647, %v144
    %vm663 = vcmp.le.f32.partialorder %v662, 0.7853982
    %vm664 = vcmp.lt.s32.totalorder %v144, 0
    %v665 = vand.u32 %v144, 2139095040
    %v666 = vshrl.u32 %v665, 23
    %v667 = vsub.s32 %v666, 127
    %v668 = vand.u32 2147483647, %v144
    %v669 = vand.u32 %v668, 8388607
    %v670 = vor.u32 %v669, 8388608
    %v671 = vsub.s32 0, %v670
    %v672 = vadd.s32 %v667, 1
    %vm673 = vcmp.gt.s32.totalorder %v672, 0
    %v674 = vsel %vm673, %v672, 0
    %v675 = vshrl.u32 %v674, 5
    %v676 = vand.u32 %v674, 31
    %v677 = vsub.s32 32, %v676
    %v678 = vshrl.u32 683565275, %v677
    %v679 = vshll.u32 683565275, %v676
    %v680 = vshrl.u32 2475754826, %v677
    %v681 = vor.u32 %v679, %v680
    %v682 = vshll.u32 2475754826, %v676
    %v683 = vshrl.u32 2131351028, %v677
    %v684 = vor.u32 %v682, %v683
    %v685 = vshll.u32 2131351028, %v676
    %v686 = vshrl.u32 2102212464, %v677
    %v687 = vor.u32 %v685, %v686
    %v688 = vshll.u32 2102212464, %v676
    %v689 = vshrl.u32 920167782, %v677
    %v690 = vor.u32 %v688, %v689
    %v691 = vshll.u32 920167782, %v676
    %v692 = vshrl.u32 1326507024, %v677
    %v693 = vor.u32 %v691, %v692
    %vm694 = vcmp.lt.s32.totalorder %v675, 1
    %vm695 = vcmp.lt.s32.totalorder %v675, 2
    %vm696 = vcmp.lt.s32.totalorder %v675, 3
    %vm697 = vcmp.lt.s32.totalorder %v675, 4
    %v698 = vsel %vm694, %v678, %v681
    %v699 = vsel %vm697, %v687, 2102212464
    %v700 = vsel %vm696, %v684, %v699
    %v701 = vsel %vm695, %v698, %v700
    %v702 = vsel %vm694, %v681, %v684
    %v703 = vsel %vm697, %v690, 920167782
    %v704 = vsel %vm696, %v687, %v703
    %v705 = vsel %vm695, %v702, %v704
    %v706 = vsel %vm694, %v684, %v687
    %v707 = vsel %vm697, %v693, 1326507024
    %v708 = vsel %vm696, %v690, %v707
    %v709 = vsel %vm695, %v706, %v708
    %v710 = vshll.u32 %v670, 8
    %v711 = vmul.u32.u64.compose %v710, %v709
    %v712 = vextract.low.u32 %v711
    %v713 = vextract.high.u32 %v711
    %v714 = vmul.u32.u64.compose %v710, %v705
    %v715 = vextract.low.u32 %v714
    %v716 = vextract.high.u32 %v714
    %v717 = vmul.u32 %v710, %v701
    %v718 = vadd.s32 %v713, %v715
    %vm719 = vc.u32 %v713, %v715
    %v720 = vadd.s32 %v716, 1
    %v721 = vsel %vm719, %v720, %v716
    %v722 = vadd.s32 %v717, %v721
    %v723 = vadd.s32 %v722, 536870912
    %v724 = vshrl.u32 %v723, 30
    %v725 = vshll.u32 %v724, 30
    %v726 = vsub.s32 %v722, %v725
    %vm727 = vcmp.lt.s32.totalorder %v726, 0
    %v728 = vsub.s32 0, %v726
    %v729 = vsel %vm727, %v728, %v726
    %v730 = vclz %v729
    %v731 = vsub.s32 %v730, 2
    %vm732 = vcmp.gt.s32.totalorder 0, %v731
    %v733 = vsel %vm732, 0, %v731
    %v734 = vsub.s32 32, %v733
    %v735 = vshll.u32 %v726, %v733
    %v736 = vshrl.u32 %v718, %v734
    %v737 = vor.u32 %v735, %v736
    %v738 = vsub.s32 4294967266, %v733
    %v739 = vadd.s32 %v738, 127
    %v740 = vshll.u32 %v739, 23
    %v741 = vor.u32 4788187, %v740
    %v742 = vand.u32 2147483647, %v741
    %v744 = vcvt.s32.f32 %v737
    %v745 = vmul.f32 %v744, %v742
    %v746 = vxor.u32 %v745, 2147483648
    %v747 = vsel %vm664, %v746, %v745
    %v748 = vsub.s32 4, %v724
    %v749 = vsel %vm664, %v748, %v724
    %v750 = vsel %vm663, %v144, %v747
    %v751 = vsel %vm663, 0, %v749
    %v752 = vcosq.f32.pop %v750
    %v753 = vsinq.f32.pop %v750
    %vm754 = vweird.f32 %v144
    %v755 = vand.u32 %v751, 3
    %vm756 = vcmp.lt.s32.totalorder %v755, 2
    %vm757 = vcmp.eq.s32.totalorder %v755, 0
    %v758 = vxor.u32 %v753, 2147483648
    %v759 = vsel %vm757, %v752, %v758
    %vm760 = vcmp.eq.s32.totalorder %v755, 2
    %v761 = vxor.u32 %v752, 2147483648
    %v762 = vsel %vm760, %v761, %v753
    %v763 = vsel %vm756, %v759, %v762
    %v764 = vsel %vm754, nan, %v763
    %v765 = vand.u32 2147483647, %v145
    %vm766 = vcmp.le.f32.partialorder %v765, 0.7853982
    %vm767 = vcmp.lt.s32.totalorder %v145, 0
    %v768 = vand.u32 %v145, 2139095040
    %v769 = vshrl.u32 %v768, 23
    %v770 = vsub.s32 %v769, 127
    %v771 = vand.u32 2147483647, %v145
    %v772 = vand.u32 %v771, 8388607
    %v773 = vor.u32 %v772, 8388608
    %v774 = vsub.s32 0, %v773
    %v775 = vadd.s32 %v770, 1
    %vm776 = vcmp.gt.s32.totalorder %v775, 0
    %v777 = vsel %vm776, %v775, 0
    %v778 = vshrl.u32 %v777, 5
    %v779 = vand.u32 %v777, 31
    %v780 = vsub.s32 32, %v779
    %v781 = vshrl.u32 683565275, %v780
    %v782 = vshll.u32 683565275, %v779
    %v783 = vshrl.u32 2475754826, %v780
    %v784 = vor.u32 %v782, %v783
    %v785 = vshll.u32 2475754826, %v779
    %v786 = vshrl.u32 2131351028, %v780
    %v787 = vor.u32 %v785, %v786
    %v788 = vshll.u32 2131351028, %v779
    %v789 = vshrl.u32 2102212464, %v780
    %v790 = vor.u32 %v788, %v789
    %v791 = vshll.u32 2102212464, %v779
    %v792 = vshrl.u32 920167782, %v780
    %v793 = vor.u32 %v791, %v792
    %v794 = vshll.u32 920167782, %v779
    %v795 = vshrl.u32 1326507024, %v780
    %v796 = vor.u32 %v794, %v795
    %vm797 = vcmp.lt.s32.totalorder %v778, 1
    %vm798 = vcmp.lt.s32.totalorder %v778, 2
    %vm799 = vcmp.lt.s32.totalorder %v778, 3
    %vm800 = vcmp.lt.s32.totalorder %v778, 4
    %v801 = vsel %vm797, %v781, %v784
    %v802 = vsel %vm800, %v790, 2102212464
    %v803 = vsel %vm799, %v787, %v802
    %v804 = vsel %vm798, %v801, %v803
    %v805 = vsel %vm797, %v784, %v787
    %v806 = vsel %vm800, %v793, 920167782
    %v807 = vsel %vm799, %v790, %v806
    %v808 = vsel %vm798, %v805, %v807
    %v809 = vsel %vm797, %v787, %v790
    %v810 = vsel %vm800, %v796, 1326507024
    %v811 = vsel %vm799, %v793, %v810
    %v812 = vsel %vm798, %v809, %v811
    %v813 = vshll.u32 %v773, 8
    %v814 = vmul.u32.u64.compose %v813, %v812
    %v815 = vextract.low.u32 %v814
    %v816 = vextract.high.u32 %v814
    %v817 = vmul.u32.u64.compose %v813, %v808
    %v818 = vextract.low.u32 %v817
    %v819 = vextract.high.u32 %v817
    %v820 = vmul.u32 %v813, %v804
    %v821 = vadd.s32 %v816, %v818
    %vm822 = vc.u32 %v816, %v818
    %v823 = vadd.s32 %v819, 1
    %v824 = vsel %vm822, %v823, %v819
    %v825 = vadd.s32 %v820, %v824
    %v826 = vadd.s32 %v825, 536870912
    %v827 = vshrl.u32 %v826, 30
    %v828 = vshll.u32 %v827, 30
    %v829 = vsub.s32 %v825, %v828
    %vm830 = vcmp.lt.s32.totalorder %v829, 0
    %v831 = vsub.s32 0, %v829
    %v832 = vsel %vm830, %v831, %v829
    %v833 = vclz %v832
    %v834 = vsub.s32 %v833, 2
    %vm835 = vcmp.gt.s32.totalorder 0, %v834
    %v836 = vsel %vm835, 0, %v834
    %v837 = vsub.s32 32, %v836
    %v838 = vshll.u32 %v829, %v836
    %v839 = vshrl.u32 %v821, %v837
    %v840 = vor.u32 %v838, %v839
    %v841 = vsub.s32 4294967266, %v836
    %v842 = vadd.s32 %v841, 127
    %v843 = vshll.u32 %v842, 23
    %v844 = vor.u32 4788187, %v843
    %v845 = vand.u32 2147483647, %v844
    %v847 = vcvt.s32.f32 %v840
    %v848 = vmul.f32 %v847, %v845
    %v849 = vxor.u32 %v848, 2147483648
    %v850 = vsel %vm767, %v849, %v848
    %v851 = vsub.s32 4, %v827
    %v852 = vsel %vm767, %v851, %v827
    %v853 = vsel %vm766, %v145, %v850
    %v854 = vsel %vm766, 0, %v852
    %v855 = vcosq.f32.pop %v853
    %v856 = vsinq.f32.pop %v853
    %vm857 = vweird.f32 %v145
    %v858 = vand.u32 %v854, 3
    %vm859 = vcmp.lt.s32.totalorder %v858, 2
    %vm860 = vcmp.eq.s32.totalorder %v858, 0
    %v861 = vxor.u32 %v856, 2147483648
    %v862 = vsel %vm860, %v855, %v861
    %vm863 = vcmp.eq.s32.totalorder %v858, 2
    %v864 = vxor.u32 %v855, 2147483648
    %v865 = vsel %vm863, %v864, %v856
    %v866 = vsel %vm859, %v862, %v865
    %v867 = vsel %vm857, nan, %v866
    %v868 = vand.u32 2147483647, %v146
    %vm869 = vcmp.le.f32.partialorder %v868, 0.7853982
    %vm870 = vcmp.lt.s32.totalorder %v146, 0
    %v871 = vand.u32 %v146, 2139095040
    %v872 = vshrl.u32 %v871, 23
    %v873 = vsub.s32 %v872, 127
    %v874 = vand.u32 2147483647, %v146
    %v875 = vand.u32 %v874, 8388607
    %v876 = vor.u32 %v875, 8388608
    %v877 = vsub.s32 0, %v876
    %v878 = vadd.s32 %v873, 1
    %vm879 = vcmp.gt.s32.totalorder %v878, 0
    %v880 = vsel %vm879, %v878, 0
    %v881 = vshrl.u32 %v880, 5
    %v882 = vand.u32 %v880, 31
    %v883 = vsub.s32 32, %v882
    %v884 = vshrl.u32 683565275, %v883
    %v885 = vshll.u32 683565275, %v882
    %v886 = vshrl.u32 2475754826, %v883
    %v887 = vor.u32 %v885, %v886
    %v888 = vshll.u32 2475754826, %v882
    %v889 = vshrl.u32 2131351028, %v883
    %v890 = vor.u32 %v888, %v889
    %v891 = vshll.u32 2131351028, %v882
    %v892 = vshrl.u32 2102212464, %v883
    %v893 = vor.u32 %v891, %v892
    %v894 = vshll.u32 2102212464, %v882
    %v895 = vshrl.u32 920167782, %v883
    %v896 = vor.u32 %v894, %v895
    %v897 = vshll.u32 920167782, %v882
    %v898 = vshrl.u32 1326507024, %v883
    %v899 = vor.u32 %v897, %v898
    %vm900 = vcmp.lt.s32.totalorder %v881, 1
    %vm901 = vcmp.lt.s32.totalorder %v881, 2
    %vm902 = vcmp.lt.s32.totalorder %v881, 3
    %vm903 = vcmp.lt.s32.totalorder %v881, 4
    %v904 = vsel %vm900, %v884, %v887
    %v905 = vsel %vm903, %v893, 2102212464
    %v906 = vsel %vm902, %v890, %v905
    %v907 = vsel %vm901, %v904, %v906
    %v908 = vsel %vm900, %v887, %v890
    %v909 = vsel %vm903, %v896, 920167782
    %v910 = vsel %vm902, %v893, %v909
    %v911 = vsel %vm901, %v908, %v910
    %v912 = vsel %vm900, %v890, %v893
    %v913 = vsel %vm903, %v899, 1326507024
    %v914 = vsel %vm902, %v896, %v913
    %v915 = vsel %vm901, %v912, %v914
    %v916 = vshll.u32 %v876, 8
    %v917 = vmul.u32.u64.compose %v916, %v915
    %v918 = vextract.low.u32 %v917
    %v919 = vextract.high.u32 %v917
    %v920 = vmul.u32.u64.compose %v916, %v911
    %v921 = vextract.low.u32 %v920
    %v922 = vextract.high.u32 %v920
    %v923 = vmul.u32 %v916, %v907
    %v924 = vadd.s32 %v919, %v921
    %vm925 = vc.u32 %v919, %v921
    %v926 = vadd.s32 %v922, 1
    %v927 = vsel %vm925, %v926, %v922
    %v928 = vadd.s32 %v923, %v927
    %v929 = vadd.s32 %v928, 536870912
    %v930 = vshrl.u32 %v929, 30
    %v931 = vshll.u32 %v930, 30
    %v932 = vsub.s32 %v928, %v931
    %vm933 = vcmp.lt.s32.totalorder %v932, 0
    %v934 = vsub.s32 0, %v932
    %v935 = vsel %vm933, %v934, %v932
    %v936 = vclz %v935
    %v937 = vsub.s32 %v936, 2
    %vm938 = vcmp.gt.s32.totalorder 0, %v937
    %v939 = vsel %vm938, 0, %v937
    %v940 = vsub.s32 32, %v939
    %v941 = vshll.u32 %v932, %v939
    %v942 = vshrl.u32 %v924, %v940
    %v943 = vor.u32 %v941, %v942
    %v944 = vsub.s32 4294967266, %v939
    %v945 = vadd.s32 %v944, 127
    %v946 = vshll.u32 %v945, 23
    %v947 = vor.u32 4788187, %v946
    %v948 = vand.u32 2147483647, %v947
    %v950 = vcvt.s32.f32 %v943
    %v951 = vmul.f32 %v950, %v948
    %v952 = vxor.u32 %v951, 2147483648
    %v953 = vsel %vm870, %v952, %v951
    %v954 = vsub.s32 4, %v930
    %v955 = vsel %vm870, %v954, %v930
    %v956 = vsel %vm869, %v146, %v953
    %v957 = vsel %vm869, 0, %v955
    %v958 = vcosq.f32.pop %v956
    %v959 = vsinq.f32.pop %v956
    %vm960 = vweird.f32 %v146
    %v961 = vand.u32 %v957, 3
    %vm962 = vcmp.lt.s32.totalorder %v961, 2
    %vm963 = vcmp.eq.s32.totalorder %v961, 0
    %v964 = vxor.u32 %v959, 2147483648
    %v965 = vsel %vm963, %v958, %v964
    %vm966 = vcmp.eq.s32.totalorder %v961, 2
    %v967 = vxor.u32 %v958, 2147483648
    %v968 = vsel %vm966, %v967, %v959
    %v969 = vsel %vm962, %v965, %v968
    %v970 = vsel %vm960, nan, %v969
    %v971 = vmul.f32 %v116, %v249
    %v972 = vmul.f32 %v118, %v352
    %v973 = vmul.f32 %v120, %v455
    %v974 = vmul.f32 %v122, %v558
    %v975 = vmul.f32 %v124, %v661
    %v976 = vmul.f32 %v126, %v764
    %v977 = vmul.f32 %v128, %v867
    %v978 = vmul.f32 %v130, %v970
    %v979 = vand.u32 2147483647, %v139
    %vm980 = vcmp.le.f32.partialorder %v979, 0.7853982
    %vm981 = vcmp.lt.s32.totalorder %v139, 0
    %v982 = vand.u32 %v139, 2139095040
    %v983 = vshrl.u32 %v982, 23
    %v984 = vsub.s32 %v983, 127
    %v985 = vand.u32 2147483647, %v139
    %v986 = vand.u32 %v985, 8388607
    %v987 = vor.u32 %v986, 8388608
    %v988 = vsub.s32 0, %v987
    %v989 = vadd.s32 %v984, 1
    %vm990 = vcmp.gt.s32.totalorder %v989, 0
    %v991 = vsel %vm990, %v989, 0
    %v992 = vshrl.u32 %v991, 5
    %v993 = vand.u32 %v991, 31
    %v994 = vsub.s32 32, %v993
    %v995 = vshrl.u32 683565275, %v994
    %v996 = vshll.u32 683565275, %v993
    %v997 = vshrl.u32 2475754826, %v994
    %v998 = vor.u32 %v996, %v997
    %v999 = vshll.u32 2475754826, %v993
    %v1000 = vshrl.u32 2131351028, %v994
    %v1001 = vor.u32 %v999, %v1000
    %v1002 = vshll.u32 2131351028, %v993
    %v1003 = vshrl.u32 2102212464, %v994
    %v1004 = vor.u32 %v1002, %v1003
    %v1005 = vshll.u32 2102212464, %v993
    %v1006 = vshrl.u32 920167782, %v994
    %v1007 = vor.u32 %v1005, %v1006
    %v1008 = vshll.u32 920167782, %v993
    %v1009 = vshrl.u32 1326507024, %v994
    %v1010 = vor.u32 %v1008, %v1009
    %vm1011 = vcmp.lt.s32.totalorder %v992, 1
    %vm1012 = vcmp.lt.s32.totalorder %v992, 2
    %vm1013 = vcmp.lt.s32.totalorder %v992, 3
    %vm1014 = vcmp.lt.s32.totalorder %v992, 4
    %v1015 = vsel %vm1011, %v995, %v998
    %v1016 = vsel %vm1014, %v1004, 2102212464
    %v1017 = vsel %vm1013, %v1001, %v1016
    %v1018 = vsel %vm1012, %v1015, %v1017
    %v1019 = vsel %vm1011, %v998, %v1001
    %v1020 = vsel %vm1014, %v1007, 920167782
    %v1021 = vsel %vm1013, %v1004, %v1020
    %v1022 = vsel %vm1012, %v1019, %v1021
    %v1023 = vsel %vm1011, %v1001, %v1004
    %v1024 = vsel %vm1014, %v1010, 1326507024
    %v1025 = vsel %vm1013, %v1007, %v1024
    %v1026 = vsel %vm1012, %v1023, %v1025
    %v1027 = vshll.u32 %v987, 8
    %v1028 = vmul.u32.u64.compose %v1027, %v1026
    %v1029 = vextract.low.u32 %v1028
    %v1030 = vextract.high.u32 %v1028
    %v1031 = vmul.u32.u64.compose %v1027, %v1022
    %v1032 = vextract.low.u32 %v1031
    %v1033 = vextract.high.u32 %v1031
    %v1034 = vmul.u32 %v1027, %v1018
    %v1035 = vadd.s32 %v1030, %v1032
    %vm1036 = vc.u32 %v1030, %v1032
    %v1037 = vadd.s32 %v1033, 1
    %v1038 = vsel %vm1036, %v1037, %v1033
    %v1039 = vadd.s32 %v1034, %v1038
    %v1040 = vadd.s32 %v1039, 536870912
    %v1041 = vshrl.u32 %v1040, 30
    %v1042 = vshll.u32 %v1041, 30
    %v1043 = vsub.s32 %v1039, %v1042
    %vm1044 = vcmp.lt.s32.totalorder %v1043, 0
    %v1045 = vsub.s32 0, %v1043
    %v1046 = vsel %vm1044, %v1045, %v1043
    %v1047 = vclz %v1046
    %v1048 = vsub.s32 %v1047, 2
    %vm1049 = vcmp.gt.s32.totalorder 0, %v1048
    %v1050 = vsel %vm1049, 0, %v1048
    %v1051 = vsub.s32 32, %v1050
    %v1052 = vshll.u32 %v1043, %v1050
    %v1053 = vshrl.u32 %v1035, %v1051
    %v1054 = vor.u32 %v1052, %v1053
    %v1055 = vsub.s32 4294967266, %v1050
    %v1056 = vadd.s32 %v1055, 127
    %v1057 = vshll.u32 %v1056, 23
    %v1058 = vor.u32 4788187, %v1057
    %v1059 = vand.u32 2147483647, %v1058
    %v1061 = vcvt.s32.f32 %v1054
    %v1062 = vmul.f32 %v1061, %v1059
    %v1063 = vxor.u32 %v1062, 2147483648
    %v1064 = vsel %vm981, %v1063, %v1062
    %v1065 = vsub.s32 4, %v1041
    %v1066 = vsel %vm981, %v1065, %v1041
    %v1067 = vsel %vm980, %v139, %v1064
    %v1068 = vsel %vm980, 0, %v1066
    %v1069 = vcosq.f32.pop %v1067
    %v1070 = vsinq.f32.pop %v1067
    %vm1071 = vweird.f32 %v139
    %v1072 = vadd.s32 %v1068, 3
    %v1073 = vand.u32 %v1072, 3
    %vm1074 = vcmp.lt.s32.totalorder %v1073, 2
    %vm1075 = vcmp.eq.s32.totalorder %v1073, 0
    %v1076 = vxor.u32 %v1070, 2147483648
    %v1077 = vsel %vm1075, %v1069, %v1076
    %vm1078 = vcmp.eq.s32.totalorder %v1073, 2
    %v1079 = vxor.u32 %v1069, 2147483648
    %v1080 = vsel %vm1078, %v1079, %v1070
    %v1081 = vsel %vm1074, %v1077, %v1080
    %v1082 = vsel %vm1071, nan, %v1081
    %v1083 = vand.u32 2147483647, %v140
    %vm1084 = vcmp.le.f32.partialorder %v1083, 0.7853982
    %vm1085 = vcmp.lt.s32.totalorder %v140, 0
    %v1086 = vand.u32 %v140, 2139095040
    %v1087 = vshrl.u32 %v1086, 23
    %v1088 = vsub.s32 %v1087, 127
    %v1089 = vand.u32 2147483647, %v140
    %v1090 = vand.u32 %v1089, 8388607
    %v1091 = vor.u32 %v1090, 8388608
    %v1092 = vsub.s32 0, %v1091
    %v1093 = vadd.s32 %v1088, 1
    %vm1094 = vcmp.gt.s32.totalorder %v1093, 0
    %v1095 = vsel %vm1094, %v1093, 0
    %v1096 = vshrl.u32 %v1095, 5
    %v1097 = vand.u32 %v1095, 31
    %v1098 = vsub.s32 32, %v1097
    %v1099 = vshrl.u32 683565275, %v1098
    %v1100 = vshll.u32 683565275, %v1097
    %v1101 = vshrl.u32 2475754826, %v1098
    %v1102 = vor.u32 %v1100, %v1101
    %v1103 = vshll.u32 2475754826, %v1097
    %v1104 = vshrl.u32 2131351028, %v1098
    %v1105 = vor.u32 %v1103, %v1104
    %v1106 = vshll.u32 2131351028, %v1097
    %v1107 = vshrl.u32 2102212464, %v1098
    %v1108 = vor.u32 %v1106, %v1107
    %v1109 = vshll.u32 2102212464, %v1097
    %v1110 = vshrl.u32 920167782, %v1098
    %v1111 = vor.u32 %v1109, %v1110
    %v1112 = vshll.u32 920167782, %v1097
    %v1113 = vshrl.u32 1326507024, %v1098
    %v1114 = vor.u32 %v1112, %v1113
    %vm1115 = vcmp.lt.s32.totalorder %v1096, 1
    %vm1116 = vcmp.lt.s32.totalorder %v1096, 2
    %vm1117 = vcmp.lt.s32.totalorder %v1096, 3
    %vm1118 = vcmp.lt.s32.totalorder %v1096, 4
    %v1119 = vsel %vm1115, %v1099, %v1102
    %v1120 = vsel %vm1118, %v1108, 2102212464
    %v1121 = vsel %vm1117, %v1105, %v1120
    %v1122 = vsel %vm1116, %v1119, %v1121
    %v1123 = vsel %vm1115, %v1102, %v1105
    %v1124 = vsel %vm1118, %v1111, 920167782
    %v1125 = vsel %vm1117, %v1108, %v1124
    %v1126 = vsel %vm1116, %v1123, %v1125
    %v1127 = vsel %vm1115, %v1105, %v1108
    %v1128 = vsel %vm1118, %v1114, 1326507024
    %v1129 = vsel %vm1117, %v1111, %v1128
    %v1130 = vsel %vm1116, %v1127, %v1129
    %v1131 = vshll.u32 %v1091, 8
    %v1132 = vmul.u32.u64.compose %v1131, %v1130
    %v1133 = vextract.low.u32 %v1132
    %v1134 = vextract.high.u32 %v1132
    %v1135 = vmul.u32.u64.compose %v1131, %v1126
    %v1136 = vextract.low.u32 %v1135
    %v1137 = vextract.high.u32 %v1135
    %v1138 = vmul.u32 %v1131, %v1122
    %v1139 = vadd.s32 %v1134, %v1136
    %vm1140 = vc.u32 %v1134, %v1136
    %v1141 = vadd.s32 %v1137, 1
    %v1142 = vsel %vm1140, %v1141, %v1137
    %v1143 = vadd.s32 %v1138, %v1142
    %v1144 = vadd.s32 %v1143, 536870912
    %v1145 = vshrl.u32 %v1144, 30
    %v1146 = vshll.u32 %v1145, 30
    %v1147 = vsub.s32 %v1143, %v1146
    %vm1148 = vcmp.lt.s32.totalorder %v1147, 0
    %v1149 = vsub.s32 0, %v1147
    %v1150 = vsel %vm1148, %v1149, %v1147
    %v1151 = vclz %v1150
    %v1152 = vsub.s32 %v1151, 2
    %vm1153 = vcmp.gt.s32.totalorder 0, %v1152
    %v1154 = vsel %vm1153, 0, %v1152
    %v1155 = vsub.s32 32, %v1154
    %v1156 = vshll.u32 %v1147, %v1154
    %v1157 = vshrl.u32 %v1139, %v1155
    %v1158 = vor.u32 %v1156, %v1157
    %v1159 = vsub.s32 4294967266, %v1154
    %v1160 = vadd.s32 %v1159, 127
    %v1161 = vshll.u32 %v1160, 23
    %v1162 = vor.u32 4788187, %v1161
    %v1163 = vand.u32 2147483647, %v1162
    %v1165 = vcvt.s32.f32 %v1158
    %v1166 = vmul.f32 %v1165, %v1163
    %v1167 = vxor.u32 %v1166, 2147483648
    %v1168 = vsel %vm1085, %v1167, %v1166
    %v1169 = vsub.s32 4, %v1145
    %v1170 = vsel %vm1085, %v1169, %v1145
    %v1171 = vsel %vm1084, %v140, %v1168
    %v1172 = vsel %vm1084, 0, %v1170
    %v1173 = vcosq.f32.pop %v1171
    %v1174 = vsinq.f32.pop %v1171
    %vm1175 = vweird.f32 %v140
    %v1176 = vadd.s32 %v1172, 3
    %v1177 = vand.u32 %v1176, 3
    %vm1178 = vcmp.lt.s32.totalorder %v1177, 2
    %vm1179 = vcmp.eq.s32.totalorder %v1177, 0
    %v1180 = vxor.u32 %v1174, 2147483648
    %v1181 = vsel %vm1179, %v1173, %v1180
    %vm1182 = vcmp.eq.s32.totalorder %v1177, 2
    %v1183 = vxor.u32 %v1173, 2147483648
    %v1184 = vsel %vm1182, %v1183, %v1174
    %v1185 = vsel %vm1178, %v1181, %v1184
    %v1186 = vsel %vm1175, nan, %v1185
    %v1187 = vand.u32 2147483647, %v141
    %vm1188 = vcmp.le.f32.partialorder %v1187, 0.7853982
    %vm1189 = vcmp.lt.s32.totalorder %v141, 0
    %v1190 = vand.u32 %v141, 2139095040
    %v1191 = vshrl.u32 %v1190, 23
    %v1192 = vsub.s32 %v1191, 127
    %v1193 = vand.u32 2147483647, %v141
    %v1194 = vand.u32 %v1193, 8388607
    %v1195 = vor.u32 %v1194, 8388608
    %v1196 = vsub.s32 0, %v1195
    %v1197 = vadd.s32 %v1192, 1
    %vm1198 = vcmp.gt.s32.totalorder %v1197, 0
    %v1199 = vsel %vm1198, %v1197, 0
    %v1200 = vshrl.u32 %v1199, 5
    %v1201 = vand.u32 %v1199, 31
    %v1202 = vsub.s32 32, %v1201
    %v1203 = vshrl.u32 683565275, %v1202
    %v1204 = vshll.u32 683565275, %v1201
    %v1205 = vshrl.u32 2475754826, %v1202
    %v1206 = vor.u32 %v1204, %v1205
    %v1207 = vshll.u32 2475754826, %v1201
    %v1208 = vshrl.u32 2131351028, %v1202
    %v1209 = vor.u32 %v1207, %v1208
    %v1210 = vshll.u32 2131351028, %v1201
    %v1211 = vshrl.u32 2102212464, %v1202
    %v1212 = vor.u32 %v1210, %v1211
    %v1213 = vshll.u32 2102212464, %v1201
    %v1214 = vshrl.u32 920167782, %v1202
    %v1215 = vor.u32 %v1213, %v1214
    %v1216 = vshll.u32 920167782, %v1201
    %v1217 = vshrl.u32 1326507024, %v1202
    %v1218 = vor.u32 %v1216, %v1217
    %vm1219 = vcmp.lt.s32.totalorder %v1200, 1
    %vm1220 = vcmp.lt.s32.totalorder %v1200, 2
    %vm1221 = vcmp.lt.s32.totalorder %v1200, 3
    %vm1222 = vcmp.lt.s32.totalorder %v1200, 4
    %v1223 = vsel %vm1219, %v1203, %v1206
    %v1224 = vsel %vm1222, %v1212, 2102212464
    %v1225 = vsel %vm1221, %v1209, %v1224
    %v1226 = vsel %vm1220, %v1223, %v1225
    %v1227 = vsel %vm1219, %v1206, %v1209
    %v1228 = vsel %vm1222, %v1215, 920167782
    %v1229 = vsel %vm1221, %v1212, %v1228
    %v1230 = vsel %vm1220, %v1227, %v1229
    %v1231 = vsel %vm1219, %v1209, %v1212
    %v1232 = vsel %vm1222, %v1218, 1326507024
    %v1233 = vsel %vm1221, %v1215, %v1232
    %v1234 = vsel %vm1220, %v1231, %v1233
    %v1235 = vshll.u32 %v1195, 8
    %v1236 = vmul.u32.u64.compose %v1235, %v1234
    %v1237 = vextract.low.u32 %v1236
    %v1238 = vextract.high.u32 %v1236
    %v1239 = vmul.u32.u64.compose %v1235, %v1230
    %v1240 = vextract.low.u32 %v1239
    %v1241 = vextract.high.u32 %v1239
    %v1242 = vmul.u32 %v1235, %v1226
    %v1243 = vadd.s32 %v1238, %v1240
    %vm1244 = vc.u32 %v1238, %v1240
    %v1245 = vadd.s32 %v1241, 1
    %v1246 = vsel %vm1244, %v1245, %v1241
    %v1247 = vadd.s32 %v1242, %v1246
    %v1248 = vadd.s32 %v1247, 536870912
    %v1249 = vshrl.u32 %v1248, 30
    %v1250 = vshll.u32 %v1249, 30
    %v1251 = vsub.s32 %v1247, %v1250
    %vm1252 = vcmp.lt.s32.totalorder %v1251, 0
    %v1253 = vsub.s32 0, %v1251
    %v1254 = vsel %vm1252, %v1253, %v1251
    %v1255 = vclz %v1254
    %v1256 = vsub.s32 %v1255, 2
    %vm1257 = vcmp.gt.s32.totalorder 0, %v1256
    %v1258 = vsel %vm1257, 0, %v1256
    %v1259 = vsub.s32 32, %v1258
    %v1260 = vshll.u32 %v1251, %v1258
    %v1261 = vshrl.u32 %v1243, %v1259
    %v1262 = vor.u32 %v1260, %v1261
    %v1263 = vsub.s32 4294967266, %v1258
    %v1264 = vadd.s32 %v1263, 127
    %v1265 = vshll.u32 %v1264, 23
    %v1266 = vor.u32 4788187, %v1265
    %v1267 = vand.u32 2147483647, %v1266
    %v1269 = vcvt.s32.f32 %v1262
    %v1270 = vmul.f32 %v1269, %v1267
    %v1271 = vxor.u32 %v1270, 2147483648
    %v1272 = vsel %vm1189, %v1271, %v1270
    %v1273 = vsub.s32 4, %v1249
    %v1274 = vsel %vm1189, %v1273, %v1249
    %v1275 = vsel %vm1188, %v141, %v1272
    %v1276 = vsel %vm1188, 0, %v1274
    %v1277 = vcosq.f32.pop %v1275
    %v1278 = vsinq.f32.pop %v1275
    %vm1279 = vweird.f32 %v141
    %v1280 = vadd.s32 %v1276, 3
    %v1281 = vand.u32 %v1280, 3
    %vm1282 = vcmp.lt.s32.totalorder %v1281, 2
    %vm1283 = vcmp.eq.s32.totalorder %v1281, 0
    %v1284 = vxor.u32 %v1278, 2147483648
    %v1285 = vsel %vm1283, %v1277, %v1284
    %vm1286 = vcmp.eq.s32.totalorder %v1281, 2
    %v1287 = vxor.u32 %v1277, 2147483648
    %v1288 = vsel %vm1286, %v1287, %v1278
    %v1289 = vsel %vm1282, %v1285, %v1288
    %v1290 = vsel %vm1279, nan, %v1289
    %v1291 = vand.u32 2147483647, %v142
    %vm1292 = vcmp.le.f32.partialorder %v1291, 0.7853982
    %vm1293 = vcmp.lt.s32.totalorder %v142, 0
    %v1294 = vand.u32 %v142, 2139095040
    %v1295 = vshrl.u32 %v1294, 23
    %v1296 = vsub.s32 %v1295, 127
    %v1297 = vand.u32 2147483647, %v142
    %v1298 = vand.u32 %v1297, 8388607
    %v1299 = vor.u32 %v1298, 8388608
    %v1300 = vsub.s32 0, %v1299
    %v1301 = vadd.s32 %v1296, 1
    %vm1302 = vcmp.gt.s32.totalorder %v1301, 0
    %v1303 = vsel %vm1302, %v1301, 0
    %v1304 = vshrl.u32 %v1303, 5
    %v1305 = vand.u32 %v1303, 31
    %v1306 = vsub.s32 32, %v1305
    %v1307 = vshrl.u32 683565275, %v1306
    %v1308 = vshll.u32 683565275, %v1305
    %v1309 = vshrl.u32 2475754826, %v1306
    %v1310 = vor.u32 %v1308, %v1309
    %v1311 = vshll.u32 2475754826, %v1305
    %v1312 = vshrl.u32 2131351028, %v1306
    %v1313 = vor.u32 %v1311, %v1312
    %v1314 = vshll.u32 2131351028, %v1305
    %v1315 = vshrl.u32 2102212464, %v1306
    %v1316 = vor.u32 %v1314, %v1315
    %v1317 = vshll.u32 2102212464, %v1305
    %v1318 = vshrl.u32 920167782, %v1306
    %v1319 = vor.u32 %v1317, %v1318
    %v1320 = vshll.u32 920167782, %v1305
    %v1321 = vshrl.u32 1326507024, %v1306
    %v1322 = vor.u32 %v1320, %v1321
    %vm1323 = vcmp.lt.s32.totalorder %v1304, 1
    %vm1324 = vcmp.lt.s32.totalorder %v1304, 2
    %vm1325 = vcmp.lt.s32.totalorder %v1304, 3
    %vm1326 = vcmp.lt.s32.totalorder %v1304, 4
    %v1327 = vsel %vm1323, %v1307, %v1310
    %v1328 = vsel %vm1326, %v1316, 2102212464
    %v1329 = vsel %vm1325, %v1313, %v1328
    %v1330 = vsel %vm1324, %v1327, %v1329
    %v1331 = vsel %vm1323, %v1310, %v1313
    %v1332 = vsel %vm1326, %v1319, 920167782
    %v1333 = vsel %vm1325, %v1316, %v1332
    %v1334 = vsel %vm1324, %v1331, %v1333
    %v1335 = vsel %vm1323, %v1313, %v1316
    %v1336 = vsel %vm1326, %v1322, 1326507024
    %v1337 = vsel %vm1325, %v1319, %v1336
    %v1338 = vsel %vm1324, %v1335, %v1337
    %v1339 = vshll.u32 %v1299, 8
    %v1340 = vmul.u32.u64.compose %v1339, %v1338
    %v1341 = vextract.low.u32 %v1340
    %v1342 = vextract.high.u32 %v1340
    %v1343 = vmul.u32.u64.compose %v1339, %v1334
    %v1344 = vextract.low.u32 %v1343
    %v1345 = vextract.high.u32 %v1343
    %v1346 = vmul.u32 %v1339, %v1330
    %v1347 = vadd.s32 %v1342, %v1344
    %vm1348 = vc.u32 %v1342, %v1344
    %v1349 = vadd.s32 %v1345, 1
    %v1350 = vsel %vm1348, %v1349, %v1345
    %v1351 = vadd.s32 %v1346, %v1350
    %v1352 = vadd.s32 %v1351, 536870912
    %v1353 = vshrl.u32 %v1352, 30
    %v1354 = vshll.u32 %v1353, 30
    %v1355 = vsub.s32 %v1351, %v1354
    %vm1356 = vcmp.lt.s32.totalorder %v1355, 0
    %v1357 = vsub.s32 0, %v1355
    %v1358 = vsel %vm1356, %v1357, %v1355
    %v1359 = vclz %v1358
    %v1360 = vsub.s32 %v1359, 2
    %vm1361 = vcmp.gt.s32.totalorder 0, %v1360
    %v1362 = vsel %vm1361, 0, %v1360
    %v1363 = vsub.s32 32, %v1362
    %v1364 = vshll.u32 %v1355, %v1362
    %v1365 = vshrl.u32 %v1347, %v1363
    %v1366 = vor.u32 %v1364, %v1365
    %v1367 = vsub.s32 4294967266, %v1362
    %v1368 = vadd.s32 %v1367, 127
    %v1369 = vshll.u32 %v1368, 23
    %v1370 = vor.u32 4788187, %v1369
    %v1371 = vand.u32 2147483647, %v1370
    %v1373 = vcvt.s32.f32 %v1366
    %v1374 = vmul.f32 %v1373, %v1371
    %v1375 = vxor.u32 %v1374, 2147483648
    %v1376 = vsel %vm1293, %v1375, %v1374
    %v1377 = vsub.s32 4, %v1353
    %v1378 = vsel %vm1293, %v1377, %v1353
    %v1379 = vsel %vm1292, %v142, %v1376
    %v1380 = vsel %vm1292, 0, %v1378
    %v1381 = vcosq.f32.pop %v1379
    %v1382 = vsinq.f32.pop %v1379
    %vm1383 = vweird.f32 %v142
    %v1384 = vadd.s32 %v1380, 3
    %v1385 = vand.u32 %v1384, 3
    %vm1386 = vcmp.lt.s32.totalorder %v1385, 2
    %vm1387 = vcmp.eq.s32.totalorder %v1385, 0
    %v1388 = vxor.u32 %v1382, 2147483648
    %v1389 = vsel %vm1387, %v1381, %v1388
    %vm1390 = vcmp.eq.s32.totalorder %v1385, 2
    %v1391 = vxor.u32 %v1381, 2147483648
    %v1392 = vsel %vm1390, %v1391, %v1382
    %v1393 = vsel %vm1386, %v1389, %v1392
    %v1394 = vsel %vm1383, nan, %v1393
    %v1395 = vand.u32 2147483647, %v143
    %vm1396 = vcmp.le.f32.partialorder %v1395, 0.7853982
    %vm1397 = vcmp.lt.s32.totalorder %v143, 0
    %v1398 = vand.u32 %v143, 2139095040
    %v1399 = vshrl.u32 %v1398, 23
    %v1400 = vsub.s32 %v1399, 127
    %v1401 = vand.u32 2147483647, %v143
    %v1402 = vand.u32 %v1401, 8388607
    %v1403 = vor.u32 %v1402, 8388608
    %v1404 = vsub.s32 0, %v1403
    %v1405 = vadd.s32 %v1400, 1
    %vm1406 = vcmp.gt.s32.totalorder %v1405, 0
    %v1407 = vsel %vm1406, %v1405, 0
    %v1408 = vshrl.u32 %v1407, 5
    %v1409 = vand.u32 %v1407, 31
    %v1410 = vsub.s32 32, %v1409
    %v1411 = vshrl.u32 683565275, %v1410
    %v1412 = vshll.u32 683565275, %v1409
    %v1413 = vshrl.u32 2475754826, %v1410
    %v1414 = vor.u32 %v1412, %v1413
    %v1415 = vshll.u32 2475754826, %v1409
    %v1416 = vshrl.u32 2131351028, %v1410
    %v1417 = vor.u32 %v1415, %v1416
    %v1418 = vshll.u32 2131351028, %v1409
    %v1419 = vshrl.u32 2102212464, %v1410
    %v1420 = vor.u32 %v1418, %v1419
    %v1421 = vshll.u32 2102212464, %v1409
    %v1422 = vshrl.u32 920167782, %v1410
    %v1423 = vor.u32 %v1421, %v1422
    %v1424 = vshll.u32 920167782, %v1409
    %v1425 = vshrl.u32 1326507024, %v1410
    %v1426 = vor.u32 %v1424, %v1425
    %vm1427 = vcmp.lt.s32.totalorder %v1408, 1
    %vm1428 = vcmp.lt.s32.totalorder %v1408, 2
    %vm1429 = vcmp.lt.s32.totalorder %v1408, 3
    %vm1430 = vcmp.lt.s32.totalorder %v1408, 4
    %v1431 = vsel %vm1427, %v1411, %v1414
    %v1432 = vsel %vm1430, %v1420, 2102212464
    %v1433 = vsel %vm1429, %v1417, %v1432
    %v1434 = vsel %vm1428, %v1431, %v1433
    %v1435 = vsel %vm1427, %v1414, %v1417
    %v1436 = vsel %vm1430, %v1423, 920167782
    %v1437 = vsel %vm1429, %v1420, %v1436
    %v1438 = vsel %vm1428, %v1435, %v1437
    %v1439 = vsel %vm1427, %v1417, %v1420
    %v1440 = vsel %vm1430, %v1426, 1326507024
    %v1441 = vsel %vm1429, %v1423, %v1440
    %v1442 = vsel %vm1428, %v1439, %v1441
    %v1443 = vshll.u32 %v1403, 8
    %v1444 = vmul.u32.u64.compose %v1443, %v1442
    %v1445 = vextract.low.u32 %v1444
    %v1446 = vextract.high.u32 %v1444
    %v1447 = vmul.u32.u64.compose %v1443, %v1438
    %v1448 = vextract.low.u32 %v1447
    %v1449 = vextract.high.u32 %v1447
    %v1450 = vmul.u32 %v1443, %v1434
    %v1451 = vadd.s32 %v1446, %v1448
    %vm1452 = vc.u32 %v1446, %v1448
    %v1453 = vadd.s32 %v1449, 1
    %v1454 = vsel %vm1452, %v1453, %v1449
    %v1455 = vadd.s32 %v1450, %v1454
    %v1456 = vadd.s32 %v1455, 536870912
    %v1457 = vshrl.u32 %v1456, 30
    %v1458 = vshll.u32 %v1457, 30
    %v1459 = vsub.s32 %v1455, %v1458
    %vm1460 = vcmp.lt.s32.totalorder %v1459, 0
    %v1461 = vsub.s32 0, %v1459
    %v1462 = vsel %vm1460, %v1461, %v1459
    %v1463 = vclz %v1462
    %v1464 = vsub.s32 %v1463, 2
    %vm1465 = vcmp.gt.s32.totalorder 0, %v1464
    %v1466 = vsel %vm1465, 0, %v1464
    %v1467 = vsub.s32 32, %v1466
    %v1468 = vshll.u32 %v1459, %v1466
    %v1469 = vshrl.u32 %v1451, %v1467
    %v1470 = vor.u32 %v1468, %v1469
    %v1471 = vsub.s32 4294967266, %v1466
    %v1472 = vadd.s32 %v1471, 127
    %v1473 = vshll.u32 %v1472, 23
    %v1474 = vor.u32 4788187, %v1473
    %v1475 = vand.u32 2147483647, %v1474
    %v1477 = vcvt.s32.f32 %v1470
    %v1478 = vmul.f32 %v1477, %v1475
    %v1479 = vxor.u32 %v1478, 2147483648
    %v1480 = vsel %vm1397, %v1479, %v1478
    %v1481 = vsub.s32 4, %v1457
    %v1482 = vsel %vm1397, %v1481, %v1457
    %v1483 = vsel %vm1396, %v143, %v1480
    %v1484 = vsel %vm1396, 0, %v1482
    %v1485 = vcosq.f32.pop %v1483
    %v1486 = vsinq.f32.pop %v1483
    %vm1487 = vweird.f32 %v143
    %v1488 = vadd.s32 %v1484, 3
    %v1489 = vand.u32 %v1488, 3
    %vm1490 = vcmp.lt.s32.totalorder %v1489, 2
    %vm1491 = vcmp.eq.s32.totalorder %v1489, 0
    %v1492 = vxor.u32 %v1486, 2147483648
    %v1493 = vsel %vm1491, %v1485, %v1492
    %vm1494 = vcmp.eq.s32.totalorder %v1489, 2
    %v1495 = vxor.u32 %v1485, 2147483648
    %v1496 = vsel %vm1494, %v1495, %v1486
    %v1497 = vsel %vm1490, %v1493, %v1496
    %v1498 = vsel %vm1487, nan, %v1497
    %v1499 = vand.u32 2147483647, %v144
    %vm1500 = vcmp.le.f32.partialorder %v1499, 0.7853982
    %vm1501 = vcmp.lt.s32.totalorder %v144, 0
    %v1502 = vand.u32 %v144, 2139095040
    %v1503 = vshrl.u32 %v1502, 23
    %v1504 = vsub.s32 %v1503, 127
    %v1505 = vand.u32 2147483647, %v144
    %v1506 = vand.u32 %v1505, 8388607
    %v1507 = vor.u32 %v1506, 8388608
    %v1508 = vsub.s32 0, %v1507
    %v1509 = vadd.s32 %v1504, 1
    %vm1510 = vcmp.gt.s32.totalorder %v1509, 0
    %v1511 = vsel %vm1510, %v1509, 0
    %v1512 = vshrl.u32 %v1511, 5
    %v1513 = vand.u32 %v1511, 31
    %v1514 = vsub.s32 32, %v1513
    %v1515 = vshrl.u32 683565275, %v1514
    %v1516 = vshll.u32 683565275, %v1513
    %v1517 = vshrl.u32 2475754826, %v1514
    %v1518 = vor.u32 %v1516, %v1517
    %v1519 = vshll.u32 2475754826, %v1513
    %v1520 = vshrl.u32 2131351028, %v1514
    %v1521 = vor.u32 %v1519, %v1520
    %v1522 = vshll.u32 2131351028, %v1513
    %v1523 = vshrl.u32 2102212464, %v1514
    %v1524 = vor.u32 %v1522, %v1523
    %v1525 = vshll.u32 2102212464, %v1513
    %v1526 = vshrl.u32 920167782, %v1514
    %v1527 = vor.u32 %v1525, %v1526
    %v1528 = vshll.u32 920167782, %v1513
    %v1529 = vshrl.u32 1326507024, %v1514
    %v1530 = vor.u32 %v1528, %v1529
    %vm1531 = vcmp.lt.s32.totalorder %v1512, 1
    %vm1532 = vcmp.lt.s32.totalorder %v1512, 2
    %vm1533 = vcmp.lt.s32.totalorder %v1512, 3
    %vm1534 = vcmp.lt.s32.totalorder %v1512, 4
    %v1535 = vsel %vm1531, %v1515, %v1518
    %v1536 = vsel %vm1534, %v1524, 2102212464
    %v1537 = vsel %vm1533, %v1521, %v1536
    %v1538 = vsel %vm1532, %v1535, %v1537
    %v1539 = vsel %vm1531, %v1518, %v1521
    %v1540 = vsel %vm1534, %v1527, 920167782
    %v1541 = vsel %vm1533, %v1524, %v1540
    %v1542 = vsel %vm1532, %v1539, %v1541
    %v1543 = vsel %vm1531, %v1521, %v1524
    %v1544 = vsel %vm1534, %v1530, 1326507024
    %v1545 = vsel %vm1533, %v1527, %v1544
    %v1546 = vsel %vm1532, %v1543, %v1545
    %v1547 = vshll.u32 %v1507, 8
    %v1548 = vmul.u32.u64.compose %v1547, %v1546
    %v1549 = vextract.low.u32 %v1548
    %v1550 = vextract.high.u32 %v1548
    %v1551 = vmul.u32.u64.compose %v1547, %v1542
    %v1552 = vextract.low.u32 %v1551
    %v1553 = vextract.high.u32 %v1551
    %v1554 = vmul.u32 %v1547, %v1538
    %v1555 = vadd.s32 %v1550, %v1552
    %vm1556 = vc.u32 %v1550, %v1552
    %v1557 = vadd.s32 %v1553, 1
    %v1558 = vsel %vm1556, %v1557, %v1553
    %v1559 = vadd.s32 %v1554, %v1558
    %v1560 = vadd.s32 %v1559, 536870912
    %v1561 = vshrl.u32 %v1560, 30
    %v1562 = vshll.u32 %v1561, 30
    %v1563 = vsub.s32 %v1559, %v1562
    %vm1564 = vcmp.lt.s32.totalorder %v1563, 0
    %v1565 = vsub.s32 0, %v1563
    %v1566 = vsel %vm1564, %v1565, %v1563
    %v1567 = vclz %v1566
    %v1568 = vsub.s32 %v1567, 2
    %vm1569 = vcmp.gt.s32.totalorder 0, %v1568
    %v1570 = vsel %vm1569, 0, %v1568
    %v1571 = vsub.s32 32, %v1570
    %v1572 = vshll.u32 %v1563, %v1570
    %v1573 = vshrl.u32 %v1555, %v1571
    %v1574 = vor.u32 %v1572, %v1573
    %v1575 = vsub.s32 4294967266, %v1570
    %v1576 = vadd.s32 %v1575, 127
    %v1577 = vshll.u32 %v1576, 23
    %v1578 = vor.u32 4788187, %v1577
    %v1579 = vand.u32 2147483647, %v1578
    %v1581 = vcvt.s32.f32 %v1574
    %v1582 = vmul.f32 %v1581, %v1579
    %v1583 = vxor.u32 %v1582, 2147483648
    %v1584 = vsel %vm1501, %v1583, %v1582
    %v1585 = vsub.s32 4, %v1561
    %v1586 = vsel %vm1501, %v1585, %v1561
    %v1587 = vsel %vm1500, %v144, %v1584
    %v1588 = vsel %vm1500, 0, %v1586
    %v1589 = vcosq.f32.pop %v1587
    %v1590 = vsinq.f32.pop %v1587
    %vm1591 = vweird.f32 %v144
    %v1592 = vadd.s32 %v1588, 3
    %v1593 = vand.u32 %v1592, 3
    %vm1594 = vcmp.lt.s32.totalorder %v1593, 2
    %vm1595 = vcmp.eq.s32.totalorder %v1593, 0
    %v1596 = vxor.u32 %v1590, 2147483648
    %v1597 = vsel %vm1595, %v1589, %v1596
    %vm1598 = vcmp.eq.s32.totalorder %v1593, 2
    %v1599 = vxor.u32 %v1589, 2147483648
    %v1600 = vsel %vm1598, %v1599, %v1590
    %v1601 = vsel %vm1594, %v1597, %v1600
    %v1602 = vsel %vm1591, nan, %v1601
    %v1603 = vand.u32 2147483647, %v145
    %vm1604 = vcmp.le.f32.partialorder %v1603, 0.7853982
    %vm1605 = vcmp.lt.s32.totalorder %v145, 0
    %v1606 = vand.u32 %v145, 2139095040
    %v1607 = vshrl.u32 %v1606, 23
    %v1608 = vsub.s32 %v1607, 127
    %v1609 = vand.u32 2147483647, %v145
    %v1610 = vand.u32 %v1609, 8388607
    %v1611 = vor.u32 %v1610, 8388608
    %v1612 = vsub.s32 0, %v1611
    %v1613 = vadd.s32 %v1608, 1
    %vm1614 = vcmp.gt.s32.totalorder %v1613, 0
    %v1615 = vsel %vm1614, %v1613, 0
    %v1616 = vshrl.u32 %v1615, 5
    %v1617 = vand.u32 %v1615, 31
    %v1618 = vsub.s32 32, %v1617
    %v1619 = vshrl.u32 683565275, %v1618
    %v1620 = vshll.u32 683565275, %v1617
    %v1621 = vshrl.u32 2475754826, %v1618
    %v1622 = vor.u32 %v1620, %v1621
    %v1623 = vshll.u32 2475754826, %v1617
    %v1624 = vshrl.u32 2131351028, %v1618
    %v1625 = vor.u32 %v1623, %v1624
    %v1626 = vshll.u32 2131351028, %v1617
    %v1627 = vshrl.u32 2102212464, %v1618
    %v1628 = vor.u32 %v1626, %v1627
    %v1629 = vshll.u32 2102212464, %v1617
    %v1630 = vshrl.u32 920167782, %v1618
    %v1631 = vor.u32 %v1629, %v1630
    %v1632 = vshll.u32 920167782, %v1617
    %v1633 = vshrl.u32 1326507024, %v1618
    %v1634 = vor.u32 %v1632, %v1633
    %vm1635 = vcmp.lt.s32.totalorder %v1616, 1
    %vm1636 = vcmp.lt.s32.totalorder %v1616, 2
    %vm1637 = vcmp.lt.s32.totalorder %v1616, 3
    %vm1638 = vcmp.lt.s32.totalorder %v1616, 4
    %v1639 = vsel %vm1635, %v1619, %v1622
    %v1640 = vsel %vm1638, %v1628, 2102212464
    %v1641 = vsel %vm1637, %v1625, %v1640
    %v1642 = vsel %vm1636, %v1639, %v1641
    %v1643 = vsel %vm1635, %v1622, %v1625
    %v1644 = vsel %vm1638, %v1631, 920167782
    %v1645 = vsel %vm1637, %v1628, %v1644
    %v1646 = vsel %vm1636, %v1643, %v1645
    %v1647 = vsel %vm1635, %v1625, %v1628
    %v1648 = vsel %vm1638, %v1634, 1326507024
    %v1649 = vsel %vm1637, %v1631, %v1648
    %v1650 = vsel %vm1636, %v1647, %v1649
    %v1651 = vshll.u32 %v1611, 8
    %v1652 = vmul.u32.u64.compose %v1651, %v1650
    %v1653 = vextract.low.u32 %v1652
    %v1654 = vextract.high.u32 %v1652
    %v1655 = vmul.u32.u64.compose %v1651, %v1646
    %v1656 = vextract.low.u32 %v1655
    %v1657 = vextract.high.u32 %v1655
    %v1658 = vmul.u32 %v1651, %v1642
    %v1659 = vadd.s32 %v1654, %v1656
    %vm1660 = vc.u32 %v1654, %v1656
    %v1661 = vadd.s32 %v1657, 1
    %v1662 = vsel %vm1660, %v1661, %v1657
    %v1663 = vadd.s32 %v1658, %v1662
    %v1664 = vadd.s32 %v1663, 536870912
    %v1665 = vshrl.u32 %v1664, 30
    %v1666 = vshll.u32 %v1665, 30
    %v1667 = vsub.s32 %v1663, %v1666
    %vm1668 = vcmp.lt.s32.totalorder %v1667, 0
    %v1669 = vsub.s32 0, %v1667
    %v1670 = vsel %vm1668, %v1669, %v1667
    %v1671 = vclz %v1670
    %v1672 = vsub.s32 %v1671, 2
    %vm1673 = vcmp.gt.s32.totalorder 0, %v1672
    %v1674 = vsel %vm1673, 0, %v1672
    %v1675 = vsub.s32 32, %v1674
    %v1676 = vshll.u32 %v1667, %v1674
    %v1677 = vshrl.u32 %v1659, %v1675
    %v1678 = vor.u32 %v1676, %v1677
    %v1679 = vsub.s32 4294967266, %v1674
    %v1680 = vadd.s32 %v1679, 127
    %v1681 = vshll.u32 %v1680, 23
    %v1682 = vor.u32 4788187, %v1681
    %v1683 = vand.u32 2147483647, %v1682
    %v1685 = vcvt.s32.f32 %v1678
    %v1686 = vmul.f32 %v1685, %v1683
    %v1687 = vxor.u32 %v1686, 2147483648
    %v1688 = vsel %vm1605, %v1687, %v1686
    %v1689 = vsub.s32 4, %v1665
    %v1690 = vsel %vm1605, %v1689, %v1665
    %v1691 = vsel %vm1604, %v145, %v1688
    %v1692 = vsel %vm1604, 0, %v1690
    %v1693 = vcosq.f32.pop %v1691
    %v1694 = vsinq.f32.pop %v1691
    %vm1695 = vweird.f32 %v145
    %v1696 = vadd.s32 %v1692, 3
    %v1697 = vand.u32 %v1696, 3
    %vm1698 = vcmp.lt.s32.totalorder %v1697, 2
    %vm1699 = vcmp.eq.s32.totalorder %v1697, 0
    %v1700 = vxor.u32 %v1694, 2147483648
    %v1701 = vsel %vm1699, %v1693, %v1700
    %vm1702 = vcmp.eq.s32.totalorder %v1697, 2
    %v1703 = vxor.u32 %v1693, 2147483648
    %v1704 = vsel %vm1702, %v1703, %v1694
    %v1705 = vsel %vm1698, %v1701, %v1704
    %v1706 = vsel %vm1695, nan, %v1705
    %v1707 = vand.u32 2147483647, %v146
    %vm1708 = vcmp.le.f32.partialorder %v1707, 0.7853982
    %vm1709 = vcmp.lt.s32.totalorder %v146, 0
    %v1710 = vand.u32 %v146, 2139095040
    %v1711 = vshrl.u32 %v1710, 23
    %v1712 = vsub.s32 %v1711, 127
    %v1713 = vand.u32 2147483647, %v146
    %v1714 = vand.u32 %v1713, 8388607
    %v1715 = vor.u32 %v1714, 8388608
    %v1716 = vsub.s32 0, %v1715
    %v1717 = vadd.s32 %v1712, 1
    %vm1718 = vcmp.gt.s32.totalorder %v1717, 0
    %v1719 = vsel %vm1718, %v1717, 0
    %v1720 = vshrl.u32 %v1719, 5
    %v1721 = vand.u32 %v1719, 31
    %v1722 = vsub.s32 32, %v1721
    %v1723 = vshrl.u32 683565275, %v1722
    %v1724 = vshll.u32 683565275, %v1721
    %v1725 = vshrl.u32 2475754826, %v1722
    %v1726 = vor.u32 %v1724, %v1725
    %v1727 = vshll.u32 2475754826, %v1721
    %v1728 = vshrl.u32 2131351028, %v1722
    %v1729 = vor.u32 %v1727, %v1728
    %v1730 = vshll.u32 2131351028, %v1721
    %v1731 = vshrl.u32 2102212464, %v1722
    %v1732 = vor.u32 %v1730, %v1731
    %v1733 = vshll.u32 2102212464, %v1721
    %v1734 = vshrl.u32 920167782, %v1722
    %v1735 = vor.u32 %v1733, %v1734
    %v1736 = vshll.u32 920167782, %v1721
    %v1737 = vshrl.u32 1326507024, %v1722
    %v1738 = vor.u32 %v1736, %v1737
    %vm1739 = vcmp.lt.s32.totalorder %v1720, 1
    %vm1740 = vcmp.lt.s32.totalorder %v1720, 2
    %vm1741 = vcmp.lt.s32.totalorder %v1720, 3
    %vm1742 = vcmp.lt.s32.totalorder %v1720, 4
    %v1743 = vsel %vm1739, %v1723, %v1726
    %v1744 = vsel %vm1742, %v1732, 2102212464
    %v1745 = vsel %vm1741, %v1729, %v1744
    %v1746 = vsel %vm1740, %v1743, %v1745
    %v1747 = vsel %vm1739, %v1726, %v1729
    %v1748 = vsel %vm1742, %v1735, 920167782
    %v1749 = vsel %vm1741, %v1732, %v1748
    %v1750 = vsel %vm1740, %v1747, %v1749
    %v1751 = vsel %vm1739, %v1729, %v1732
    %v1752 = vsel %vm1742, %v1738, 1326507024
    %v1753 = vsel %vm1741, %v1735, %v1752
    %v1754 = vsel %vm1740, %v1751, %v1753
    %v1755 = vshll.u32 %v1715, 8
    %v1756 = vmul.u32.u64.compose %v1755, %v1754
    %v1757 = vextract.low.u32 %v1756
    %v1758 = vextract.high.u32 %v1756
    %v1759 = vmul.u32.u64.compose %v1755, %v1750
    %v1760 = vextract.low.u32 %v1759
    %v1761 = vextract.high.u32 %v1759
    %v1762 = vmul.u32 %v1755, %v1746
    %v1763 = vadd.s32 %v1758, %v1760
    %vm1764 = vc.u32 %v1758, %v1760
    %v1765 = vadd.s32 %v1761, 1
    %v1766 = vsel %vm1764, %v1765, %v1761
    %v1767 = vadd.s32 %v1762, %v1766
    %v1768 = vadd.s32 %v1767, 536870912
    %v1769 = vshrl.u32 %v1768, 30
    %v1770 = vshll.u32 %v1769, 30
    %v1771 = vsub.s32 %v1767, %v1770
    %vm1772 = vcmp.lt.s32.totalorder %v1771, 0
    %v1773 = vsub.s32 0, %v1771
    %v1774 = vsel %vm1772, %v1773, %v1771
    %v1775 = vclz %v1774
    %v1776 = vsub.s32 %v1775, 2
    %vm1777 = vcmp.gt.s32.totalorder 0, %v1776
    %v1778 = vsel %vm1777, 0, %v1776
    %v1779 = vsub.s32 32, %v1778
    %v1780 = vshll.u32 %v1771, %v1778
    %v1781 = vshrl.u32 %v1763, %v1779
    %v1782 = vor.u32 %v1780, %v1781
    %v1783 = vsub.s32 4294967266, %v1778
    %v1784 = vadd.s32 %v1783, 127
    %v1785 = vshll.u32 %v1784, 23
    %v1786 = vor.u32 4788187, %v1785
    %v1787 = vand.u32 2147483647, %v1786
    %v1789 = vcvt.s32.f32 %v1782
    %v1790 = vmul.f32 %v1789, %v1787
    %v1791 = vxor.u32 %v1790, 2147483648
    %v1792 = vsel %vm1709, %v1791, %v1790
    %v1793 = vsub.s32 4, %v1769
    %v1794 = vsel %vm1709, %v1793, %v1769
    %v1795 = vsel %vm1708, %v146, %v1792
    %v1796 = vsel %vm1708, 0, %v1794
    %v1797 = vcosq.f32.pop %v1795
    %v1798 = vsinq.f32.pop %v1795
    %vm1799 = vweird.f32 %v146
    %v1800 = vadd.s32 %v1796, 3
    %v1801 = vand.u32 %v1800, 3
    %vm1802 = vcmp.lt.s32.totalorder %v1801, 2
    %vm1803 = vcmp.eq.s32.totalorder %v1801, 0
    %v1804 = vxor.u32 %v1798, 2147483648
    %v1805 = vsel %vm1803, %v1797, %v1804
    %vm1806 = vcmp.eq.s32.totalorder %v1801, 2
    %v1807 = vxor.u32 %v1797, 2147483648
    %v1808 = vsel %vm1806, %v1807, %v1798
    %v1809 = vsel %vm1802, %v1805, %v1808
    %v1810 = vsel %vm1799, nan, %v1809
    %v1811 = vmul.f32 %v116, %v1082
    %v1812 = vmul.f32 %v118, %v1186
    %v1813 = vmul.f32 %v120, %v1290
    %v1814 = vmul.f32 %v122, %v1394
    %v1815 = vmul.f32 %v124, %v1498
    %v1816 = vmul.f32 %v126, %v1602
    %v1817 = vmul.f32 %v128, %v1706
    %v1818 = vmul.f32 %v130, %v1810
    %v1819 = vld [vmem:[%s2] sm:$0x3f]
    %v1820 = vld [vmem:[%s2 + $0x8] sm:$0x3f]
    %v1821 = vld [vmem:[%s2 + $0x10] sm:$0x3f]
    %v1822 = vld [vmem:[%s2 + $0x18] sm:$0x3f]
    %v1823 = vld [vmem:[%s2 + $0x20] sm:$0x3f]
    %v1824 = vld [vmem:[%s2 + $0x28] sm:$0x3f]
    %v1825 = vld [vmem:[%s2 + $0x30] sm:$0x3f]
    %v1826 = vld [vmem:[%s2 + $0x38] sm:$0x3f]
    %s1827 = scalar_lea.vmem %s2, 64
    %v1828 = vld [vmem:[%s1827] sm:$0x3f]
    %v1829 = vld [vmem:[%s1827 + $0x8] sm:$0x3f]
    %v1830 = vld [vmem:[%s1827 + $0x10] sm:$0x3f]
    %v1831 = vld [vmem:[%s1827 + $0x18] sm:$0x3f]
    %v1832 = vld [vmem:[%s1827 + $0x20] sm:$0x3f]
    %v1833 = vld [vmem:[%s1827 + $0x28] sm:$0x3f]
    %v1834 = vld [vmem:[%s1827 + $0x30] sm:$0x3f]
    %v1835 = vld [vmem:[%s1827 + $0x38] sm:$0x3f]
    %v1836 = vmul.f32 %v1819, %v971
    %v1837 = vmul.f32 %v1820, %v972
    %v1838 = vmul.f32 %v1821, %v973
    %v1839 = vmul.f32 %v1822, %v974
    %v1840 = vmul.f32 %v1823, %v975
    %v1841 = vmul.f32 %v1824, %v976
    %v1842 = vmul.f32 %v1825, %v977
    %v1843 = vmul.f32 %v1826, %v978
    %v1844 = vmul.f32 %v1828, %v1811
    %v1845 = vmul.f32 %v1829, %v1812
    %v1846 = vmul.f32 %v1830, %v1813
    %v1847 = vmul.f32 %v1831, %v1814
    %v1848 = vmul.f32 %v1832, %v1815
    %v1849 = vmul.f32 %v1833, %v1816
    %v1850 = vmul.f32 %v1834, %v1817
    %v1851 = vmul.f32 %v1835, %v1818
    %v1852 = vadd.f32 %v1836, %v1844
    %v1853 = vadd.f32 %v1837, %v1845
    %v1854 = vadd.f32 %v1838, %v1846
    %v1855 = vadd.f32 %v1839, %v1847
    %v1856 = vadd.f32 %v1840, %v1848
    %v1857 = vadd.f32 %v1841, %v1849
    %v1858 = vadd.f32 %v1842, %v1850
    %v1859 = vadd.f32 %v1843, %v1851
    %1860 = vst [vmem:[%s3] sm:$0x3f] %v1852
    %1861 = vst [vmem:[%s3 + $0x8] sm:$0x3f] %v1853
    %1862 = vst [vmem:[%s3 + $0x10] sm:$0x3f] %v1854
    %1863 = vst [vmem:[%s3 + $0x18] sm:$0x3f] %v1855
    %1864 = vst [vmem:[%s3 + $0x20] sm:$0x3f] %v1856
    %1865 = vst [vmem:[%s3 + $0x28] sm:$0x3f] %v1857
    %1866 = vst [vmem:[%s3 + $0x30] sm:$0x3f] %v1858
    %1867 = vst [vmem:[%s3 + $0x38] sm:$0x3f] %v1859
    %v1868 = vmul.f32 %v1828, %v971
    %v1869 = vmul.f32 %v1829, %v972
    %v1870 = vmul.f32 %v1830, %v973
    %v1871 = vmul.f32 %v1831, %v974
    %v1872 = vmul.f32 %v1832, %v975
    %v1873 = vmul.f32 %v1833, %v976
    %v1874 = vmul.f32 %v1834, %v977
    %v1875 = vmul.f32 %v1835, %v978
    %v1876 = vmul.f32 %v1819, %v1811
    %v1877 = vmul.f32 %v1820, %v1812
    %v1878 = vmul.f32 %v1821, %v1813
    %v1879 = vmul.f32 %v1822, %v1814
    %v1880 = vmul.f32 %v1823, %v1815
    %v1881 = vmul.f32 %v1824, %v1816
    %v1882 = vmul.f32 %v1825, %v1817
    %v1883 = vmul.f32 %v1826, %v1818
    %v1884 = vsub.f32 %v1868, %v1876
    %v1885 = vsub.f32 %v1869, %v1877
    %v1886 = vsub.f32 %v1870, %v1878
    %v1887 = vsub.f32 %v1871, %v1879
    %v1888 = vsub.f32 %v1872, %v1880
    %v1889 = vsub.f32 %v1873, %v1881
    %v1890 = vsub.f32 %v1874, %v1882
    %v1891 = vsub.f32 %v1875, %v1883
    %s1892 = scalar_lea.vmem %s3, 64
    %1893 = vst [vmem:[%s1892] sm:$0x3f] %v1884
    %1894 = vst [vmem:[%s1892 + $0x8] sm:$0x3f] %v1885
    %1895 = vst [vmem:[%s1892 + $0x10] sm:$0x3f] %v1886
    %1896 = vst [vmem:[%s1892 + $0x18] sm:$0x3f] %v1887
    %1897 = vst [vmem:[%s1892 + $0x20] sm:$0x3f] %v1888
    %1898 = vst [vmem:[%s1892 + $0x28] sm:$0x3f] %v1889
    %1899 = vst [vmem:[%s1892 + $0x30] sm:$0x3f] %v1890
    %1900 = vst [vmem:[%s1892 + $0x38] sm:$0x3f] %v1891
    // Predicated region
    $region18: #{rank_x_hologram_forward.1} parent=1 // pred_check
      _
    $region19: #{rank_x_hologram_forward.1} parent=1 // pred_check_branch
      %1902 = sbr.rel (0) target = $region21
    $region20: #{rank_x_hologram_forward.1} parent=1 // pred_region
      _
    $region21: #{rank_x_hologram_forward.1} parent=1 // pred_fallthru
      _
    // Predicated region
    $region22: #{rank_x_hologram_forward.1} parent=1 // pred_check
      _
    $region23: #{rank_x_hologram_forward.1} parent=1 // pred_check_branch
      %1904 = sbr.rel (0) target = $region25
    $region24: #{rank_x_hologram_forward.1} parent=1 // pred_region
      _
    $region25: #{rank_x_hologram_forward.1} parent=1 // pred_fallthru
      _
    %1905 = vsyncpa [#allocation3], 1

</llo_original>
